<compile_context>
chip_gen: v7x
topology: tpu7x:2x2x1
jax: 0.10.0
libtpu: 0.0.40
codegen_flags: <defaults>
</compile_context>

<pallas_src>
import math
from functools import partial

import jax
import jax.numpy as jnp
from jax.experimental import pallas as pl
from jax.experimental.pallas import tpu as pltpu


# ---------------- fused MHA (+ residual + LayerNorm) kernel, flash-style q-tiling ----------------

def _mha_res_ln_kernel(x_ref, m_ref, wqkv_ref, bqkv_ref, wo_ref, bo_ref, ln_ref,
                       o_ref, k_cache, v_cache, *, S, D, H, Dh, TQ, eps):
    qi = pl.program_id(2)

    # ---- K/V projection: once per (stream, batch), cached in bf16 VMEM scratch ----
    @pl.when(qi == 0)
    def _():
        x_bf = x_ref[0, 0].astype(jnp.bfloat16)                      # (S, D)
        kv = jnp.dot(x_bf, wqkv_ref[0, :, D:],                       # (S,D)@(D,2D) lane-dense
                     preferred_element_type=jnp.float32)
        kv = kv + bqkv_ref[0, :, D:]                                 # (S, 2D) f32
        k = kv[:, :D]
        v = kv[:, D:]
        k_cache[...] = jnp.transpose(k.reshape(S, H, Dh), (1, 0, 2)).astype(jnp.bfloat16)
        v_cache[...] = jnp.transpose(v.reshape(S, H, Dh), (1, 0, 2)).astype(jnp.bfloat16)

    # ---- Q projection for this query tile: lane-dense (TQ,D)@(D,D) ----
    row0 = pl.multiple_of(qi * TQ, TQ)
    x_tile = x_ref[0, 0, pl.ds(row0, TQ), :].astype(jnp.float32)     # (TQ, D), residual input
    q = jnp.dot(x_tile.astype(jnp.bfloat16), wqkv_ref[0, :, :D],
                preferred_element_type=jnp.float32) + bqkv_ref[0, :, :D]
    q = q * (1.0 / math.sqrt(Dh))
    qh = jnp.transpose(q.reshape(TQ, H, Dh), (1, 0, 2)).astype(jnp.bfloat16)   # (H, TQ, Dh)

    # ---- scores + numerically-stable softmax (f32 statistics) ----
    s = jax.lax.dot_general(qh, k_cache[...], (((2,), (2,)), ((0,), (0,))),
                            preferred_element_type=jnp.float32)      # (H, TQ, S)
    mask = m_ref[0, 0].astype(jnp.float32)                           # (Mq, S), Mq in {1, TQ}
    s = s + mask[None, :, :]
    s = s - jnp.max(s, axis=-1, keepdims=True)
    p = jnp.exp(s)
    p = p * pl.reciprocal(jnp.sum(p, axis=-1, keepdims=True), approx=False)

    # ---- context + head-folded output projection (K = H*Dh = D, full MXU depth) ----
    ctx = jax.lax.dot_general(p.astype(jnp.bfloat16), v_cache[...],
                              (((2,), (1,)), ((0,), (0,))),
                              preferred_element_type=jnp.float32)    # (H, TQ, Dh)
    ctx2 = jnp.transpose(ctx, (1, 0, 2)).reshape(TQ, D).astype(jnp.bfloat16)   # (TQ, H*Dh)
    out = jnp.dot(ctx2, wo_ref[0], preferred_element_type=jnp.float32) + bo_ref[0]  # (TQ, D)

    # ---- fused residual + LayerNorm epilogue (approximates SublayerConnection4KG) ----
    y = out + x_tile
    mu = jnp.mean(y, axis=-1, keepdims=True)
    yc = y - mu
    var = jnp.mean(yc * yc, axis=-1, keepdims=True)
    yn = yc * jax.lax.rsqrt(var + eps)
    o_ref[0, 0] = (yn * ln_ref[0, 0] + ln_ref[0, 1]).astype(o_ref.dtype)


def mha_res_ln(x, mask, w_qkv, b_qkv, w_o, b_o, ln, *, num_heads, tq=128, eps=1e-12):
    """Fused multi-head self-attention + residual + LayerNorm for stacked streams.

    x     : (NS, B, S, D)     f32 activations (NS = number of fused streams)
    mask  : (NS, B, Mq, S)    additive mask, Mq == 1 (key-only) or Mq == S (per-query)
    w_qkv : (NS, D, 3D)       bf16, columns ordered [Q | K | V], each head-major
    b_qkv : (NS, 1, 3D)       f32
    w_o   : (NS, D, D)        bf16, rows (head, dh)-major -> head reduction folded into K
    b_o   : (NS, 1, D)        f32
    ln    : (NS, 2, 1, D)     f32 [gamma; beta]
    """
    NS, B, S, D = x.shape
    H = num_heads
    Dh = D // H
    Mq = mask.shape[2]
    tq = tq if (0 < tq <= S and S % tq == 0) else S
    QT = S // tq

    kernel = partial(_mha_res_ln_kernel, S=S, D=D, H=H, Dh=Dh, TQ=tq, eps=eps)

    if Mq == S:
        mask_spec = pl.BlockSpec((1, 1, tq, S), lambda s, b, q: (s, b, q, 0))
    else:
        mask_spec = pl.BlockSpec((1, 1, 1, S), lambda s, b, q: (s, b, 0, 0))

    return pl.pallas_call(
        kernel,
        grid=(NS, B, QT),
        in_specs=[
            pl.BlockSpec((1, 1, S, D), lambda s, b, q: (s, b, 0, 0)),   # x (full seq; K/V source)
            mask_spec,                                                   # additive mask
            pl.BlockSpec((1, D, 3 * D), lambda s, b, q: (s, 0, 0)),      # packed Wq|Wk|Wv (bf16)
            pl.BlockSpec((1, 1, 3 * D), lambda s, b, q: (s, 0, 0)),      # packed biases
            pl.BlockSpec((1, D, D), lambda s, b, q: (s, 0, 0)),          # Wo, head-folded (bf16)
            pl.BlockSpec((1, 1, D), lambda s, b, q: (s, 0, 0)),          # bo
            pl.BlockSpec((1, 2, 1, D), lambda s, b, q: (s, 0, 0, 0)),    # LN gamma/beta
        ],
        out_specs=pl.BlockSpec((1, 1, tq, D), lambda s, b, q: (s, b, q, 0)),
        out_shape=jax.ShapeDtypeStruct((NS, B, S, D), x.dtype),
        scratch_shapes=[
            pltpu.VMEM((H, S, Dh), jnp.bfloat16),   # K cache (persists across q-tiles)
            pltpu.VMEM((H, S, Dh), jnp.bfloat16),   # V cache
        ],
        compiler_params=pltpu.CompilerParams(
            dimension_semantics=("parallel", "parallel", "arbitrary"),
            vmem_limit_bytes=48 * 1024 * 1024,
        ),
    )(x, mask, w_qkv, b_qkv, w_o, b_o, ln)


# ------------------------------------ forward pass ------------------------------------

def _as_additive_3d(mask, batch, seq):
    mask = jnp.asarray(mask, jnp.float32)
    if mask.ndim == 2:                          # (B, S) key-only -> (B, 1, S)
        mask = mask[:, None, :]
    return mask


def encoder_layer_4kg_forward(params, hidden_states, attention_mask,
                              hidden_states_ent, attention_mask_ent=None, ent_mask=None):
    # ent_mask is accepted but unused, matching the reference forward.
    heads = params["num_heads"]
    tq = params.get("tq", 128)
    B, S, _ = hidden_states.shape
    Be, Se, _ = hidden_states_ent.shape
    if attention_mask_ent is None:
        attention_mask_ent = jnp.zeros((Be, 1, Se), jnp.float32)

    attention_mask = _as_additive_3d(attention_mask, B, S)
    attention_mask_ent = _as_additive_3d(attention_mask_ent, Be, Se)

    fused = (hidden_states.shape == hidden_states_ent.shape
             and attention_mask.shape == attention_mask_ent.shape)

    if fused:
        # Both streams in ONE pallas_call: stream axis on the grid selects attn / attn_ent.
        x = jnp.stack([hidden_states, hidden_states_ent], axis=0)
        m = jnp.stack([attention_mask, attention_mask_ent], axis=0)
        out = mha_res_ln(x, m, params["w_qkv"], params["b_qkv"], params["w_o"],
                         params["b_o"], params["ln"], num_heads=heads, tq=tq)
        return out[0], out[1]

    # Fallback when the two streams have different shapes: two calls on the same kernel.
    outs = []
    for si, (xs, ms) in enumerate(((hidden_states, attention_mask),
                                   (hidden_states_ent, attention_mask_ent))):
        o = mha_res_ln(xs[None], ms[None],
                       params["w_qkv"][si:si + 1], params["b_qkv"][si:si + 1],
                       params["w_o"][si:si + 1], params["b_o"][si:si + 1],
                       params["ln"][si:si + 1], num_heads=heads, tq=tq)
        outs.append(o[0])
    return outs[0], outs[1]


# ----------------------------------- parameter init -----------------------------------

def init_params(key, *, size, num_heads, tq=128):
    keys = iter(jax.random.split(key, 8))

    def w(shape, scale=0.05, dtype=jnp.float32):
        return (jax.random.normal(next(keys), shape, jnp.float32) * scale).astype(dtype)

    ln_one = jnp.stack([jnp.ones((1, size), jnp.float32),
                        jnp.zeros((1, size), jnp.float32)], axis=0)       # (2, 1, D)

    # Stream 0 = token attention, stream 1 = entity attention.
    return {
        "num_heads": num_heads,
        "tq": tq,
        "w_qkv": w((2, size, 3 * size), dtype=jnp.bfloat16),   # packed [Q|K|V], MXU bf16
        "b_qkv": w((2, 1, 3 * size)),
        "w_o":   w((2, size, size), dtype=jnp.bfloat16),       # (H*Dh, D) head-folded
        "b_o":   w((2, 1, size)),
        "ln":    jnp.stack([ln_one, ln_one], axis=0),          # (2, 2, 1, D)
    }


# ---------------------------------------- main -----------------------------------------

if __name__ == "__main__":
    B, S, SIZE, HEADS, TQ = 2, 16, 128, 4, 8   # lane-dense D; TQ=8 exercises 2 q-tiles/seq

    root = jax.random.PRNGKey(0)
    k_p, k_hs, k_he = jax.random.split(root, 3)

    params = init_params(k_p, size=SIZE, num_heads=HEADS, tq=TQ)

    hidden_states = jax.random.normal(k_hs, (B, S, SIZE), jnp.float32)
    hidden_states_ent = jax.random.normal(k_he, (B, S, SIZE), jnp.float32)

    # key-padding additive masks (B, 1, S): 0 = keep, -1e9 = masked (mask last key of batch 1)
    attention_mask = jnp.zeros((B, 1, S), jnp.float32).at[1, :, S - 1].set(-1e9)
    attention_mask_ent = jnp.zeros((B, 1, S), jnp.float32).at[1, :, S - 1].set(-1e9)

    x_out, ent_out = encoder_layer_4kg_forward(
        params, hidden_states, attention_mask, hidden_states_ent, attention_mask_ent)

    jax.block_until_ready((x_out, ent_out))
    assert x_out.shape == (B, S, SIZE)
    assert ent_out.shape == (B, S, SIZE)
    assert bool(jnp.all(jnp.isfinite(x_out))) and bool(jnp.all(jnp.isfinite(ent_out)))
    print("KERNEL_OK")
</pallas_src>

<mosaic_0001>
module attributes {stable_mosaic.version = 11 : i64} {
  func.func @_mha_res_ln_kernel(%arg0: i32, %arg1: i32, %arg2: i32, %arg3: memref<1x1x16x128xf32, #tpu.memory_space<vmem>>, %arg4: memref<1x1x1x16xf32, #tpu.memory_space<vmem>>, %arg5: memref<1x128x384xbf16, #tpu.memory_space<vmem>>, %arg6: memref<1x1x384xf32, #tpu.memory_space<vmem>>, %arg7: memref<1x128x128xbf16, #tpu.memory_space<vmem>>, %arg8: memref<1x1x128xf32, #tpu.memory_space<vmem>>, %arg9: memref<1x2x1x128xf32, #tpu.memory_space<vmem>>, %arg10: memref<1x1x8x128xf32, #tpu.memory_space<vmem>>, %arg11: memref<4x16x32xbf16, #tpu.memory_space<vmem>>, %arg12: memref<4x16x32xbf16, #tpu.memory_space<vmem>>) attributes {dimension_semantics = [#tpu.dimension_semantics<parallel>, #tpu.dimension_semantics<parallel>, #tpu.dimension_semantics<arbitrary>], iteration_bounds = array<i64: 2, 2, 2>, scalar_prefetch = 0 : i64, scratch_operands = 2 : i64, tpu.core_type = #tpu.core_type<tc>, window_params = [{transform_indices = @transform_0, window_bounds = array<i64: 1, 1, 16, 128>}, {transform_indices = @transform_1, window_bounds = array<i64: 1, 1, 1, 16>}, {transform_indices = @transform_2, window_bounds = array<i64: 1, 128, 384>}, {transform_indices = @transform_3, window_bounds = array<i64: 1, 1, 384>}, {transform_indices = @transform_4, window_bounds = array<i64: 1, 128, 128>}, {transform_indices = @transform_5, window_bounds = array<i64: 1, 1, 128>}, {transform_indices = @transform_6, window_bounds = array<i64: 1, 2, 1, 128>}, {transform_indices = @transform_7, window_bounds = array<i64: 1, 1, 8, 128>}]} {
    %c0_i32 = arith.constant 0 : i32
    %0 = arith.cmpi eq, %arg2, %c0_i32 : i32
    %1 = arith.extui %0 : i1 to i32
    %c0_i32_0 = arith.constant 0 : i32
    %2 = arith.cmpi ne, %1, %c0_i32_0 : i32
    scf.if %2 {
      %c0_47 = arith.constant 0 : index
      %c0_48 = arith.constant 0 : index
      %c0_49 = arith.constant 0 : index
      %c0_50 = arith.constant 0 : index
      %79 = vector.load %arg3[%c0_47, %c0_48, %c0_49, %c0_50] : memref<1x1x16x128xf32, #tpu.memory_space<vmem>>, vector<1x1x16x128xf32>
      %80 = vector.shape_cast %79 : vector<1x1x16x128xf32> to vector<16x128xf32>
      %81 = arith.truncf %80 : vector<16x128xf32> to vector<16x128xbf16>
      %c0_51 = arith.constant 0 : index
      %c0_52 = arith.constant 0 : index
      %c128 = arith.constant 128 : index
      %82 = vector.load %arg5[%c0_51, %c0_52, %c128] : memref<1x128x384xbf16, #tpu.memory_space<vmem>>, vector<1x128x256xbf16>
      %83 = vector.shape_cast %82 : vector<1x128x256xbf16> to vector<128x256xbf16>
      %cst_53 = arith.constant dense<0.000000e+00> : vector<16x256xf32>
      %84 = tpu.matmul %81, %83, %cst_53 {dimension_numbers = #tpu.dot_dimension_numbers<[1], [0], [0], [1], [0, 0, 1, 1], [], []>} : vector<16x128xbf16>, vector<128x256xbf16>, vector<16x256xf32> -> vector<16x256xf32>
      %c0_54 = arith.constant 0 : index
      %c0_55 = arith.constant 0 : index
      %c128_56 = arith.constant 128 : index
      %85 = vector.load %arg6[%c0_54, %c0_55, %c128_56] : memref<1x1x384xf32, #tpu.memory_space<vmem>>, vector<1x1x256xf32>
      %86 = vector.shape_cast %85 : vector<1x1x256xf32> to vector<1x256xf32>
      %87 = vector.broadcast %86 : vector<1x256xf32> to vector<16x256xf32>
      %88 = arith.addf %84, %87 : vector<16x256xf32>
      %89 = vector.extract_strided_slice %88 {offsets = [0, 0], sizes = [16, 128], strides = [1, 1]} : vector<16x256xf32> to vector<16x128xf32>
      %90 = vector.extract_strided_slice %88 {offsets = [0, 128], sizes = [16, 128], strides = [1, 1]} : vector<16x256xf32> to vector<16x128xf32>
      %91 = vector.shape_cast %89 : vector<16x128xf32> to vector<16x4x32xf32>
      %92 = tpu.transpose %91, [1, 0, 2] : vector<16x4x32xf32> -> vector<4x16x32xf32>
      %93 = arith.truncf %92 : vector<4x16x32xf32> to vector<4x16x32xbf16>
      %c0_57 = arith.constant 0 : index
      %c0_58 = arith.constant 0 : index
      %c0_59 = arith.constant 0 : index
      %94 = vector.load %arg11[%c0_57, %c0_58, %c0_59] : memref<4x16x32xbf16, #tpu.memory_space<vmem>>, vector<4x16x32xbf16>
      tpu.vector_store %arg11[%c0_57, %c0_58, %c0_59], %93 {strides = array<i32>} : memref<4x16x32xbf16, #tpu.memory_space<vmem>>, vector<4x16x32xbf16>,
      %95 = vector.shape_cast %90 : vector<16x128xf32> to vector<16x4x32xf32>
      %96 = tpu.transpose %95, [1, 0, 2] : vector<16x4x32xf32> -> vector<4x16x32xf32>
      %97 = arith.truncf %96 : vector<4x16x32xf32> to vector<4x16x32xbf16>
      %c0_60 = arith.constant 0 : index
      %c0_61 = arith.constant 0 : index
      %c0_62 = arith.constant 0 : index
      %98 = vector.load %arg12[%c0_60, %c0_61, %c0_62] : memref<4x16x32xbf16, #tpu.memory_space<vmem>>, vector<4x16x32xbf16>
      tpu.vector_store %arg12[%c0_60, %c0_61, %c0_62], %97 {strides = array<i32>} : memref<4x16x32xbf16, #tpu.memory_space<vmem>>, vector<4x16x32xbf16>,
    } else {
    }
    %c8_i32 = arith.constant 8 : i32
    %3 = arith.muli %arg2, %c8_i32 : i32
    %4 = tpu.assume_multiple %3, 8 : i32
    %c0 = arith.constant 0 : index
    %c0_1 = arith.constant 0 : index
    %5 = arith.index_cast %4 : i32 to index
    %c0_2 = arith.constant 0 : index
    %6 = vector.load %arg3[%c0, %c0_1, %5, %c0_2] : memref<1x1x16x128xf32, #tpu.memory_space<vmem>>, vector<1x1x8x128xf32>
    %7 = vector.shape_cast %6 : vector<1x1x8x128xf32> to vector<8x128xf32>
    %8 = arith.truncf %7 : vector<8x128xf32> to vector<8x128xbf16>
    %c0_3 = arith.constant 0 : index
    %c0_4 = arith.constant 0 : index
    %c0_5 = arith.constant 0 : index
    %9 = vector.load %arg5[%c0_3, %c0_4, %c0_5] : memref<1x128x384xbf16, #tpu.memory_space<vmem>>, vector<1x128x128xbf16>
    %10 = vector.shape_cast %9 : vector<1x128x128xbf16> to vector<128x128xbf16>
    %cst = arith.constant dense<0.000000e+00> : vector<8x128xf32>
    %11 = tpu.matmul %8, %10, %cst {dimension_numbers = #tpu.dot_dimension_numbers<[1], [0], [0], [1], [0, 0, 1, 1], [], []>} : vector<8x128xbf16>, vector<128x128xbf16>, vector<8x128xf32> -> vector<8x128xf32>
    %c0_6 = arith.constant 0 : index
    %c0_7 = arith.constant 0 : index
    %c0_8 = arith.constant 0 : index
    %12 = vector.load %arg6[%c0_6, %c0_7, %c0_8] : memref<1x1x384xf32, #tpu.memory_space<vmem>>, vector<1x1x128xf32>
    %13 = vector.shape_cast %12 : vector<1x1x128xf32> to vector<1x128xf32>
    %14 = vector.broadcast %13 : vector<1x128xf32> to vector<8x128xf32>
    %15 = arith.addf %11, %14 : vector<8x128xf32>
    %cst_9 = arith.constant 0.176776692 : f32
    %16 = vector.broadcast %cst_9 : f32 to vector<8x128xf32>
    %17 = arith.mulf %15, %16 : vector<8x128xf32>
    %18 = vector.shape_cast %17 : vector<8x128xf32> to vector<8x4x32xf32>
    %19 = tpu.transpose %18, [1, 0, 2] : vector<8x4x32xf32> -> vector<4x8x32xf32>
    %20 = arith.truncf %19 : vector<4x8x32xf32> to vector<4x8x32xbf16>
    %c0_10 = arith.constant 0 : index
    %c0_11 = arith.constant 0 : index
    %c0_12 = arith.constant 0 : index
    %21 = vector.load %arg11[%c0_10, %c0_11, %c0_12] : memref<4x16x32xbf16, #tpu.memory_space<vmem>>, vector<4x16x32xbf16>
    %cst_13 = arith.constant dense<0.000000e+00> : vector<4x8x16xf32>
    %22 = tpu.matmul %20, %21, %cst_13 {dimension_numbers = #tpu.dot_dimension_numbers<[2], [2], [1], [1], [0, 0, 0, 1, 1, 1], [0], [0]>} : vector<4x8x32xbf16>, vector<4x16x32xbf16>, vector<4x8x16xf32> -> vector<4x8x16xf32>
    %c0_14 = arith.constant 0 : index
    %c0_15 = arith.constant 0 : index
    %c0_16 = arith.constant 0 : index
    %c0_17 = arith.constant 0 : index
    %23 = vector.load %arg4[%c0_14, %c0_15, %c0_16, %c0_17] : memref<1x1x1x16xf32, #tpu.memory_space<vmem>>, vector<1x1x1x16xf32>
    %24 = vector.shape_cast %23 : vector<1x1x1x16xf32> to vector<1x16xf32>
    %25 = vector.shape_cast %24 : vector<1x16xf32> to vector<1x1x16xf32>
    %26 = vector.broadcast %25 : vector<1x1x16xf32> to vector<4x8x16xf32>
    %27 = arith.addf %22, %26 : vector<4x8x16xf32>
    %cst_18 = arith.constant dense<0xFF800000> : vector<4x8xf32>
    %28 = vector.multi_reduction <maximumf>, %27, %cst_18 [2] : vector<4x8x16xf32> to vector<4x8xf32>
    %29 = vector.shape_cast %28 : vector<4x8xf32> to vector<4x8x1xf32>
    %30 = vector.broadcast %29 : vector<4x8x1xf32> to vector<4x8x16xf32>
    %31 = arith.subf %27, %30 : vector<4x8x16xf32>
    %32 = math.exp %31 : vector<4x8x16xf32>
    %cst_19 = arith.constant dense<0.000000e+00> : vector<4x8xf32>
    %33 = vector.multi_reduction <add>, %32, %cst_19 [2] : vector<4x8x16xf32> to vector<4x8xf32>
    %34 = vector.shape_cast %33 : vector<4x8xf32> to vector<4x8x1xf32>
    %35 = tpu.reciprocal %34 : vector<4x8x1xf32> -> vector<4x8x1xf32>
    %36 = vector.broadcast %35 : vector<4x8x1xf32> to vector<4x8x16xf32>
    %37 = arith.mulf %32, %36 : vector<4x8x16xf32>
    %38 = arith.truncf %37 : vector<4x8x16xf32> to vector<4x8x16xbf16>
    %c0_20 = arith.constant 0 : index
    %c0_21 = arith.constant 0 : index
    %c0_22 = arith.constant 0 : index
    %39 = vector.load %arg12[%c0_20, %c0_21, %c0_22] : memref<4x16x32xbf16, #tpu.memory_space<vmem>>, vector<4x16x32xbf16>
    %cst_23 = arith.constant dense<0.000000e+00> : vector<4x8x32xf32>
    %40 = tpu.matmul %38, %39, %cst_23 {dimension_numbers = #tpu.dot_dimension_numbers<[2], [1], [1], [2], [0, 0, 0, 1, 1, 2], [0], [0]>} : vector<4x8x16xbf16>, vector<4x16x32xbf16>, vector<4x8x32xf32> -> vector<4x8x32xf32>
    %41 = tpu.transpose %40, [1, 0, 2] : vector<4x8x32xf32> -> vector<8x4x32xf32>
    %42 = vector.shape_cast %41 : vector<8x4x32xf32> to vector<8x128xf32>
    %43 = arith.truncf %42 : vector<8x128xf32> to vector<8x128xbf16>
    %c0_24 = arith.constant 0 : index
    %c0_25 = arith.constant 0 : index
    %c0_26 = arith.constant 0 : index
    %44 = vector.load %arg7[%c0_24, %c0_25, %c0_26] : memref<1x128x128xbf16, #tpu.memory_space<vmem>>, vector<1x128x128xbf16>
    %45 = vector.shape_cast %44 : vector<1x128x128xbf16> to vector<128x128xbf16>
    %cst_27 = arith.constant dense<0.000000e+00> : vector<8x128xf32>
    %46 = tpu.matmul %43, %45, %cst_27 {dimension_numbers = #tpu.dot_dimension_numbers<[1], [0], [0], [1], [0, 0, 1, 1], [], []>} : vector<8x128xbf16>, vector<128x128xbf16>, vector<8x128xf32> -> vector<8x128xf32>
    %c0_28 = arith.constant 0 : index
    %c0_29 = arith.constant 0 : index
    %c0_30 = arith.constant 0 : index
    %47 = vector.load %arg8[%c0_28, %c0_29, %c0_30] : memref<1x1x128xf32, #tpu.memory_space<vmem>>, vector<1x1x128xf32>
    %48 = vector.shape_cast %47 : vector<1x1x128xf32> to vector<1x128xf32>
    %49 = vector.broadcast %48 : vector<1x128xf32> to vector<8x128xf32>
    %50 = arith.addf %46, %49 : vector<8x128xf32>
    %51 = arith.addf %50, %7 : vector<8x128xf32>
    %cst_31 = arith.constant dense<0.000000e+00> : vector<8xf32>
    %52 = vector.multi_reduction <add>, %51, %cst_31 [1] : vector<8x128xf32> to vector<8xf32>
    %53 = vector.shape_cast %52 : vector<8xf32> to vector<8x1xf32>
    %cst_32 = arith.constant 1.280000e+02 : f32
    %54 = vector.broadcast %cst_32 : f32 to vector<8x1xf32>
    %55 = arith.divf %53, %54 : vector<8x1xf32>
    %56 = vector.broadcast %55 : vector<8x1xf32> to vector<8x128xf32>
    %57 = arith.subf %51, %56 : vector<8x128xf32>
    %58 = arith.mulf %57, %57 : vector<8x128xf32>
    %cst_33 = arith.constant dense<0.000000e+00> : vector<8xf32>
    %59 = vector.multi_reduction <add>, %58, %cst_33 [1] : vector<8x128xf32> to vector<8xf32>
    %60 = vector.shape_cast %59 : vector<8xf32> to vector<8x1xf32>
    %cst_34 = arith.constant 1.280000e+02 : f32
    %61 = vector.broadcast %cst_34 : f32 to vector<8x1xf32>
    %62 = arith.divf %60, %61 : vector<8x1xf32>
    %cst_35 = arith.constant 9.99999996E-13 : f32
    %63 = vector.broadcast %cst_35 : f32 to vector<8x1xf32>
    %64 = arith.addf %62, %63 : vector<8x1xf32>
    %65 = math.rsqrt %64 : vector<8x1xf32>
    %66 = vector.broadcast %65 : vector<8x1xf32> to vector<8x128xf32>
    %67 = arith.mulf %57, %66 : vector<8x128xf32>
    %c0_36 = arith.constant 0 : index
    %c0_37 = arith.constant 0 : index
    %c0_38 = arith.constant 0 : index
    %c0_39 = arith.constant 0 : index
    %68 = vector.load %arg9[%c0_36, %c0_37, %c0_38, %c0_39] : memref<1x2x1x128xf32, #tpu.memory_space<vmem>>, vector<1x1x1x128xf32>
    %69 = vector.shape_cast %68 : vector<1x1x1x128xf32> to vector<1x128xf32>
    %70 = vector.broadcast %69 : vector<1x128xf32> to vector<8x128xf32>
    %71 = arith.mulf %67, %70 : vector<8x128xf32>
    %c0_40 = arith.constant 0 : index
    %c1 = arith.constant 1 : index
    %c0_41 = arith.constant 0 : index
    %c0_42 = arith.constant 0 : index
    %72 = vector.load %arg9[%c0_40, %c1, %c0_41, %c0_42] : memref<1x2x1x128xf32, #tpu.memory_space<vmem>>, vector<1x1x1x128xf32>
    %73 = vector.shape_cast %72 : vector<1x1x1x128xf32> to vector<1x128xf32>
    %74 = vector.broadcast %73 : vector<1x128xf32> to vector<8x128xf32>
    %75 = arith.addf %71, %74 : vector<8x128xf32>
    %c0_43 = arith.constant 0 : index
    %c0_44 = arith.constant 0 : index
    %c0_45 = arith.constant 0 : index
    %c0_46 = arith.constant 0 : index
    %76 = vector.load %arg10[%c0_43, %c0_44, %c0_45, %c0_46] : memref<1x1x8x128xf32, #tpu.memory_space<vmem>>, vector<1x1x8x128xf32>
    %77 = vector.shape_cast %76 : vector<1x1x8x128xf32> to vector<8x128xf32>
    %78 = vector.shape_cast %75 : vector<8x128xf32> to vector<1x1x8x128xf32>
    tpu.vector_store %arg10[%c0_43, %c0_44, %c0_45, %c0_46], %78 {strides = array<i32>} : memref<1x1x8x128xf32, #tpu.memory_space<vmem>>, vector<1x1x8x128xf32>,
    return
  }
  func.func @transform_0(%arg0: i32, %arg1: i32, %arg2: i32) -> (i32, i32, i32, i32) {
    %c0_i32 = arith.constant 0 : i32
    %c0_i32_0 = arith.constant 0 : i32
    %c0_i32_1 = arith.constant 0 : i32
    return %arg0, %arg1, %c0_i32, %c0_i32_0 : i32, i32, i32, i32
  }
  func.func @transform_1(%arg0: i32, %arg1: i32, %arg2: i32) -> (i32, i32, i32, i32) {
    %c0_i32 = arith.constant 0 : i32
    %c0_i32_0 = arith.constant 0 : i32
    %c0_i32_1 = arith.constant 0 : i32
    return %arg0, %arg1, %c0_i32, %c0_i32_0 : i32, i32, i32, i32
  }
  func.func @transform_2(%arg0: i32, %arg1: i32, %arg2: i32) -> (i32, i32, i32) {
    %c0_i32 = arith.constant 0 : i32
    %c0_i32_0 = arith.constant 0 : i32
    %c0_i32_1 = arith.constant 0 : i32
    return %arg0, %c0_i32, %c0_i32_0 : i32, i32, i32
  }
  func.func @transform_3(%arg0: i32, %arg1: i32, %arg2: i32) -> (i32, i32, i32) {
    %c0_i32 = arith.constant 0 : i32
    %c0_i32_0 = arith.constant 0 : i32
    %c0_i32_1 = arith.constant 0 : i32
    return %arg0, %c0_i32, %c0_i32_0 : i32, i32, i32
  }
  func.func @transform_4(%arg0: i32, %arg1: i32, %arg2: i32) -> (i32, i32, i32) {
    %c0_i32 = arith.constant 0 : i32
    %c0_i32_0 = arith.constant 0 : i32
    %c0_i32_1 = arith.constant 0 : i32
    return %arg0, %c0_i32, %c0_i32_0 : i32, i32, i32
  }
  func.func @transform_5(%arg0: i32, %arg1: i32, %arg2: i32) -> (i32, i32, i32) {
    %c0_i32 = arith.constant 0 : i32
    %c0_i32_0 = arith.constant 0 : i32
    %c0_i32_1 = arith.constant 0 : i32
    return %arg0, %c0_i32, %c0_i32_0 : i32, i32, i32
  }
  func.func @transform_6(%arg0: i32, %arg1: i32, %arg2: i32) -> (i32, i32, i32, i32) {
    %c0_i32 = arith.constant 0 : i32
    %c0_i32_0 = arith.constant 0 : i32
    %c0_i32_1 = arith.constant 0 : i32
    %c0_i32_2 = arith.constant 0 : i32
    return %arg0, %c0_i32, %c0_i32_0, %c0_i32_1 : i32, i32, i32, i32
  }
  func.func @transform_7(%arg0: i32, %arg1: i32, %arg2: i32) -> (i32, i32, i32, i32) {
    %c0_i32 = arith.constant 0 : i32
    %c0_i32_0 = arith.constant 0 : i32
    return %arg0, %arg1, %arg2, %c0_i32 : i32, i32, i32, i32
  }
}

</mosaic_0001>

<llo_original>
// kernel: tpu_custom_call.1
$region0: #{tpu_custom_call.1}
  #allocation0 [shape = 'u32[]', space=smem, size = 0x4, offset = 0x4, fixed_abs, tag = 'smem constant byte address 0x4 - core index']
  #allocation1 [shape = 'u32[144,128]{1,0:T(1,128)}', space=vmem, size = 0x12000, scoped, tag = 'internal scratch']
  #allocation2 [shape = 'bf16[4,16,32]{2,1,0:T(16,128)(2,1)}', space=vmem, size = 0x4000, scoped, tag = 'scratch operand']
  #allocation3 [shape = 'bf16[4,16,32]{2,1,0:T(16,128)(2,1)}', space=vmem, size = 0x4000, scoped, tag = 'scratch operand']
  %s0 = inlined_call_operand.hbm [shape: f32[2,2,16,128], index: 0, kind: input, shape index: {}]
  %s1 = inlined_call_operand.hbm [shape: f32[2,2,1,16], index: 1, kind: input, shape index: {}]
  %s2 = inlined_call_operand.hbm [shape: bf16[2,128,384], index: 2, kind: input, shape index: {}]
  %s3 = inlined_call_operand.vmem [shape: f32[2,1,384], index: 3, kind: input, shape index: {}]
  %s4 = inlined_call_operand.hbm [shape: bf16[2,128,128], index: 4, kind: input, shape index: {}]
  %s5 = inlined_call_operand.vmem [shape: f32[2,1,128], index: 5, kind: input, shape index: {}]
  %s6 = inlined_call_operand.vmem [shape: f32[2,2,1,128], index: 6, kind: input, shape index: {}]
  %s7 = inlined_call_operand.hbm [shape: f32[2,2,16,128], index: 7, kind: output, shape index: {}]
  %s8 = sld [smem:[#allocation0]]
  $region81: #{tpu_custom_call.1} parent=0
    _
  %s10 = ssub.s32 1, %s8
  %s11 = scalar_select 0, %s10, %s8
  $region1: #{tpu_custom_call.1} parent=0
    #allocation4 [shape = 'u8[16384]{0}', space=vmem, size = 0x4000, scoped, tag = 'input window, operand 0']
    #allocation5 [shape = 's32[2]{0}', space=sflag, size = 0x8, scoped, tag = 'scoped memory for tpu_custom_call.1']
    #allocation6 [shape = 's32[2]{0}', space=sflag, size = 0x8, scoped, tag = 'scoped memory for tpu_custom_call.1']
    #allocation7 [shape = 'u8[1024]{0}', space=vmem, size = 0x400, scoped, tag = 'input window, operand 1']
    #allocation8 [shape = 's32[2]{0}', space=sflag, size = 0x8, scoped, tag = 'scoped memory for tpu_custom_call.1']
    #allocation9 [shape = 'u8[196608]{0}', space=vmem, size = 0x30000, scoped, tag = 'input window, operand 2']
    #allocation10 [shape = 'u8[65536]{0}', space=vmem, size = 0x10000, scoped, tag = 'input window, operand 4']
    #allocation11 [shape = 's32[2]{0}', space=sflag, size = 0x8, scoped, tag = 'scoped memory for tpu_custom_call.1']
    #allocation12 [shape = 'u8[8192]{0}', space=vmem, size = 0x2000, scoped, tag = 'output window, operand 0']
    %12 = vsyncpa [#allocation5], 0
    %s13 = scalar_lea.sflag [#allocation5], 1
    %14 = vsyncpa %s13, 0
    %15 = vsyncpa [#allocation8], 0
    %s16 = scalar_lea.sflag [#allocation8], 1
    %17 = vsyncpa %s16, 0
    %18 = vsyncpa [#allocation11], 0
    %s19 = scalar_lea.sflag [#allocation11], 1
    %20 = vsyncpa %s19, 0
    %21 = vsyncpa [#allocation6], 0
    %s22 = scalar_lea.sflag [#allocation6], 1
    %23 = vsyncpa %s22, 0
    loop: start=0, step=1, limit=10
    $region2: #{tpu_custom_call.1} parent=1 // loop_pre_header
      _
    $region3: #{tpu_custom_call.1} parent=1 // loop_header
      %s25 = sphi 0, %s29
      %p26 = scmp.ge.s32.totalorder %s25, 10
      %s32 = sphi 0, %s51
      %s33 = sphi 0, %s47
      %s34 = sphi 0, %s43
      %s35 = sphi 0, %s32
      %s36 = sphi 0, %s33
      %s37 = sphi 0, %s34
      %s38 = sphi 0, %s35
      %s39 = sphi 0, %s36
      %s40 = sphi 0, %s37
      %s56 = sphi 0, %s58
      %s59 = sphi 0, %s56
      %s60 = sphi 0, %s59
      %s76 = sphi 0, %s60
      %s84 = sphi 0, %s86
      %s87 = sphi 0, %s84
      %s88 = sphi 0, %s87
      %s104 = sphi 0, %s88
      %s110 = sphi 0, %s112
      %s113 = sphi 0, %s110
      %s114 = sphi 0, %s113
      %s130 = sphi 0, %s114
      %s136 = sphi 0, %s138
      %s139 = sphi 0, %s136
      %s140 = sphi 0, %s139
      %s156 = sphi 0, %s140
      %s162 = sphi 0, %s164
      %s165 = sphi 0, %s162
      %s166 = sphi 0, %s165
      %s182 = sphi 0, %s166
      %s188 = sphi 0, %s190
      %s191 = sphi 0, %s188
      %s192 = sphi 0, %s191
      %s208 = sphi 0, %s192
      %s214 = sphi 0, %s216
      %s217 = sphi 0, %s214
      %s218 = sphi 0, %s217
      %s234 = sphi 0, %s218
      %s244 = sphi 0, %s246
      %s247 = sphi 0, %s244
      %s248 = sphi 0, %s247
      %s264 = sphi 0, %s248
    $region4: #{tpu_custom_call.1} parent=1 // loop_header_branch
      %28 = sbr.rel (%p26) target = $region8
    $region5: #{tpu_custom_call.1} parent=1 // loop_body
      %s30 = ssub.s32 %s25, 1
      %s31 = ssub.s32 %s25, 2
      %s41 = sadd.s32 1, %s34
      %p42 = scmp.ge.s32.totalorder %s41, 2
      %s43 = scalar_select %p42, 0, %s41
      %s44 = sadd.s32 1, %s33
      %s45 = scalar_select %p42, %s44, %s33
      %p46 = scmp.ge.s32.totalorder %s45, 2
      %s47 = scalar_select %p46, 0, %s45
      %s48 = sadd.s32 1, %s32
      %s49 = scalar_select %p46, %s48, %s32
      %p50 = scmp.ge.s32.totalorder %s49, 2
      %s51 = scalar_select %p50, 0, %s49
      %s52 = ssub.s32 %s32, %s51
      %s53 = ssub.s32 %s33, %s47
      %s54 = sor.u32 %s52, %s53
      %p55 = scmp.eq.s32.totalorder %s54, 0
      %s57 = sadd.s32 %s56, 1
      %s58 = scalar_select %p55, %s56, %s57
      %p61 = pneg %p55
      %p62 = scmp.eq.s32.totalorder %s25, 7
      %p63 = por %p61, %p62
      %p64 = scmp.ne.s32.totalorder %s56, %s59
      %p65 = scmp.eq.s32.totalorder %s25, 0
      %p66 = por %p64, %p65
      %p67 = scmp.ne.s32.totalorder %s56, %s59
      %p68 = scmp.eq.s32.totalorder %s30, 7
      %p69 = por %p67, %p68
      %p70 = scmp.ne.s32.totalorder %s59, %s60
      %p71 = scmp.eq.s32.totalorder %s30, 0
      %p72 = por %p70, %p71
      %p73 = scmp.ne.s32.totalorder %s59, %s60
      %p74 = scmp.eq.s32.totalorder %s31, 7
      %p75 = por %p73, %p74
      %p77 = scmp.ne.s32.totalorder %s60, %s76
      %p78 = scmp.eq.s32.totalorder %s31, 0
      %p79 = por %p77, %p78
      %s80 = ssub.s32 %s32, %s51
      %s81 = ssub.s32 %s33, %s47
      %s82 = sor.u32 %s80, %s81
      %p83 = scmp.eq.s32.totalorder %s82, 0
      %s85 = sadd.s32 %s84, 1
      %s86 = scalar_select %p83, %s84, %s85
      %p89 = pneg %p83
      %p90 = scmp.eq.s32.totalorder %s25, 7
      %p91 = por %p89, %p90
      %p92 = scmp.ne.s32.totalorder %s84, %s87
      %p93 = scmp.eq.s32.totalorder %s25, 0
      %p94 = por %p92, %p93
      %p95 = scmp.ne.s32.totalorder %s84, %s87
      %p96 = scmp.eq.s32.totalorder %s30, 7
      %p97 = por %p95, %p96
      %p98 = scmp.ne.s32.totalorder %s87, %s88
      %p99 = scmp.eq.s32.totalorder %s30, 0
      %p100 = por %p98, %p99
      %p101 = scmp.ne.s32.totalorder %s87, %s88
      %p102 = scmp.eq.s32.totalorder %s31, 7
      %p103 = por %p101, %p102
      %p105 = scmp.ne.s32.totalorder %s88, %s104
      %p106 = scmp.eq.s32.totalorder %s31, 0
      %p107 = por %p105, %p106
      %s108 = ssub.s32 %s32, %s51
      %p109 = scmp.eq.s32.totalorder %s108, 0
      %s111 = sadd.s32 %s110, 1
      %s112 = scalar_select %p109, %s110, %s111
      %p115 = pneg %p109
      %p116 = scmp.eq.s32.totalorder %s25, 7
      %p117 = por %p115, %p116
      %p118 = scmp.ne.s32.totalorder %s110, %s113
      %p119 = scmp.eq.s32.totalorder %s25, 0
      %p120 = por %p118, %p119
      %p121 = scmp.ne.s32.totalorder %s110, %s113
      %p122 = scmp.eq.s32.totalorder %s30, 7
      %p123 = por %p121, %p122
      %p124 = scmp.ne.s32.totalorder %s113, %s114
      %p125 = scmp.eq.s32.totalorder %s30, 0
      %p126 = por %p124, %p125
      %p127 = scmp.ne.s32.totalorder %s113, %s114
      %p128 = scmp.eq.s32.totalorder %s31, 7
      %p129 = por %p127, %p128
      %p131 = scmp.ne.s32.totalorder %s114, %s130
      %p132 = scmp.eq.s32.totalorder %s31, 0
      %p133 = por %p131, %p132
      %s134 = ssub.s32 %s32, %s51
      %p135 = scmp.eq.s32.totalorder %s134, 0
      %s137 = sadd.s32 %s136, 1
      %s138 = scalar_select %p135, %s136, %s137
      %p141 = pneg %p135
      %p142 = scmp.eq.s32.totalorder %s25, 7
      %p143 = por %p141, %p142
      %p144 = scmp.ne.s32.totalorder %s136, %s139
      %p145 = scmp.eq.s32.totalorder %s25, 0
      %p146 = por %p144, %p145
      %p147 = scmp.ne.s32.totalorder %s136, %s139
      %p148 = scmp.eq.s32.totalorder %s30, 7
      %p149 = por %p147, %p148
      %p150 = scmp.ne.s32.totalorder %s139, %s140
      %p151 = scmp.eq.s32.totalorder %s30, 0
      %p152 = por %p150, %p151
      %p153 = scmp.ne.s32.totalorder %s139, %s140
      %p154 = scmp.eq.s32.totalorder %s31, 7
      %p155 = por %p153, %p154
      %p157 = scmp.ne.s32.totalorder %s140, %s156
      %p158 = scmp.eq.s32.totalorder %s31, 0
      %p159 = por %p157, %p158
      %s160 = ssub.s32 %s32, %s51
      %p161 = scmp.eq.s32.totalorder %s160, 0
      %s163 = sadd.s32 %s162, 1
      %s164 = scalar_select %p161, %s162, %s163
      %p167 = pneg %p161
      %p168 = scmp.eq.s32.totalorder %s25, 7
      %p169 = por %p167, %p168
      %p170 = scmp.ne.s32.totalorder %s162, %s165
      %p171 = scmp.eq.s32.totalorder %s25, 0
      %p172 = por %p170, %p171
      %p173 = scmp.ne.s32.totalorder %s162, %s165
      %p174 = scmp.eq.s32.totalorder %s30, 7
      %p175 = por %p173, %p174
      %p176 = scmp.ne.s32.totalorder %s165, %s166
      %p177 = scmp.eq.s32.totalorder %s30, 0
      %p178 = por %p176, %p177
      %p179 = scmp.ne.s32.totalorder %s165, %s166
      %p180 = scmp.eq.s32.totalorder %s31, 7
      %p181 = por %p179, %p180
      %p183 = scmp.ne.s32.totalorder %s166, %s182
      %p184 = scmp.eq.s32.totalorder %s31, 0
      %p185 = por %p183, %p184
      %s186 = ssub.s32 %s32, %s51
      %p187 = scmp.eq.s32.totalorder %s186, 0
      %s189 = sadd.s32 %s188, 1
      %s190 = scalar_select %p187, %s188, %s189
      %p193 = pneg %p187
      %p194 = scmp.eq.s32.totalorder %s25, 7
      %p195 = por %p193, %p194
      %p196 = scmp.ne.s32.totalorder %s188, %s191
      %p197 = scmp.eq.s32.totalorder %s25, 0
      %p198 = por %p196, %p197
      %p199 = scmp.ne.s32.totalorder %s188, %s191
      %p200 = scmp.eq.s32.totalorder %s30, 7
      %p201 = por %p199, %p200
      %p202 = scmp.ne.s32.totalorder %s191, %s192
      %p203 = scmp.eq.s32.totalorder %s30, 0
      %p204 = por %p202, %p203
      %p205 = scmp.ne.s32.totalorder %s191, %s192
      %p206 = scmp.eq.s32.totalorder %s31, 7
      %p207 = por %p205, %p206
      %p209 = scmp.ne.s32.totalorder %s192, %s208
      %p210 = scmp.eq.s32.totalorder %s31, 0
      %p211 = por %p209, %p210
      %s212 = ssub.s32 %s32, %s51
      %p213 = scmp.eq.s32.totalorder %s212, 0
      %s215 = sadd.s32 %s214, 1
      %s216 = scalar_select %p213, %s214, %s215
      %p219 = pneg %p213
      %p220 = scmp.eq.s32.totalorder %s25, 7
      %p221 = por %p219, %p220
      %p222 = scmp.ne.s32.totalorder %s214, %s217
      %p223 = scmp.eq.s32.totalorder %s25, 0
      %p224 = por %p222, %p223
      %p225 = scmp.ne.s32.totalorder %s214, %s217
      %p226 = scmp.eq.s32.totalorder %s30, 7
      %p227 = por %p225, %p226
      %p228 = scmp.ne.s32.totalorder %s217, %s218
      %p229 = scmp.eq.s32.totalorder %s30, 0
      %p230 = por %p228, %p229
      %p231 = scmp.ne.s32.totalorder %s217, %s218
      %p232 = scmp.eq.s32.totalorder %s31, 7
      %p233 = por %p231, %p232
      %p235 = scmp.ne.s32.totalorder %s218, %s234
      %p236 = scmp.eq.s32.totalorder %s31, 0
      %p237 = por %p235, %p236
      %s238 = ssub.s32 %s32, %s51
      %s239 = ssub.s32 %s33, %s47
      %s240 = sor.u32 %s238, %s239
      %s241 = ssub.s32 %s34, %s43
      %s242 = sor.u32 %s240, %s241
      %p243 = scmp.eq.s32.totalorder %s242, 0
      %s245 = sadd.s32 %s244, 1
      %s246 = scalar_select %p243, %s244, %s245
      %p249 = pneg %p243
      %p250 = scmp.eq.s32.totalorder %s25, 7
      %p251 = por %p249, %p250
      %p252 = scmp.ne.s32.totalorder %s244, %s247
      %p253 = scmp.eq.s32.totalorder %s25, 0
      %p254 = por %p252, %p253
      %p255 = scmp.ne.s32.totalorder %s244, %s247
      %p256 = scmp.eq.s32.totalorder %s30, 7
      %p257 = por %p255, %p256
      %p258 = scmp.ne.s32.totalorder %s247, %s248
      %p259 = scmp.eq.s32.totalorder %s30, 0
      %p260 = por %p258, %p259
      %p261 = scmp.ne.s32.totalorder %s247, %s248
      %p262 = scmp.eq.s32.totalorder %s31, 7
      %p263 = por %p261, %p262
      %p265 = scmp.ne.s32.totalorder %s248, %s264
      %p266 = scmp.eq.s32.totalorder %s31, 0
      %p267 = por %p265, %p266
      %p268 = scmp.le.s32.totalorder 1, %s25
      %p269 = scmp.lt.s32.totalorder %s25, 9
      %p270 = pnand %p268, %p269
      %p271 = pneg %p270
      // Predicated region
      $region9: #{tpu_custom_call.1} parent=5 // pred_check
        _
      $region10: #{tpu_custom_call.1} parent=5 // pred_check_branch
        %273 = sbr.rel (%p270) target = $region12
      $region11: #{tpu_custom_call.1} parent=5 // pred_region
        %s274 = ssub.s32 %s25, 1
      $region12: #{tpu_custom_call.1} parent=5 // pred_fallthru
        _
      %p275 = scmp.lt.s32.totalorder %s25, 8
      // Predicated region
      $region13: #{tpu_custom_call.1} parent=5 // pred_check
        %p276 = pneg %p275
      $region14: #{tpu_custom_call.1} parent=5 // pred_check_branch
        %278 = sbr.rel (%p276) target = $region16
      $region15: #{tpu_custom_call.1} parent=5 // pred_region
        // Predicated region
        $region17: #{tpu_custom_call.1} parent=15 // pred_check
          %p279 = pneg %p66
        $region18: #{tpu_custom_call.1} parent=15 // pred_check_branch
          %281 = sbr.rel (%p279) target = $region20
        $region19: #{tpu_custom_call.1} parent=15 // pred_region
          %s282 = sand.u32 %s56, 1
          %s283 = scalar_lea.sflag [#allocation5], %s282
          %s284 = sand.u32 %s56, 1
          %s285 = smul.addr %s284, 16
          %s286 = scalar_lea.vmem [#allocation4], %s285
          %s288 = ssub.s32 256, 256
          %289 = vsyncadd %s283, %s288
          %s290 = smul.addr %s33, 2
          %s291 = smul.addr %s32, 4
          %s292 = sadd.s32 %s290, %s291
          %s293 = smul.addr %s292, 128
          %s294 = scalar_lea.hbm %s0, %s293
          %s295 = sshll.u32 %s286, 4
          %s296 = int_to_ptr.vmem [resolvable:$true] %s295
          %301 = dma.hbm_to_vmem [thread:$0]  %s294, 256, %s296, %s283, 128, 128, 8
        $region20: #{tpu_custom_call.1} parent=15 // pred_fallthru
          _
        // Predicated region
        $region21: #{tpu_custom_call.1} parent=15 // pred_check
          %p302 = pneg %p94
        $region22: #{tpu_custom_call.1} parent=15 // pred_check_branch
          %304 = sbr.rel (%p302) target = $region24
        $region23: #{tpu_custom_call.1} parent=15 // pred_region
          %s305 = sand.u32 %s25, 1
          %s306 = scalar_lea.sflag [#allocation8], %s305
          %s307 = sand.u32 %s84, 1
          %s308 = scalar_lea.vmem [#allocation7], %s307
          %s310 = ssub.s32 16, 16
          %311 = vsyncadd %s306, %s310
          %s312 = smul.addr %s32, 2
          %s313 = sadd.s32 %s33, %s312
          %s314 = smul.addr %s313, 16
          %s315 = scalar_lea.hbm %s1, %s314
          %s317 = sshll.u32 %s308, 4
          %s318 = int_to_ptr.vmem [resolvable:$true] %s317
          %320 = dma.hbm_to_vmem [thread:$0]  %s315, 16, %s318, %s306
        $region24: #{tpu_custom_call.1} parent=15 // pred_fallthru
          _
        // Predicated region
        $region25: #{tpu_custom_call.1} parent=15 // pred_check
          %p321 = pneg %p120
        $region26: #{tpu_custom_call.1} parent=15 // pred_check_branch
          %323 = sbr.rel (%p321) target = $region28
        $region27: #{tpu_custom_call.1} parent=15 // pred_region
          %s324 = sand.u32 %s25, 1
          %s325 = scalar_lea.sflag [#allocation8], %s324
          %s326 = sand.u32 %s110, 1
          %s327 = smul.addr %s326, 192
          %s328 = scalar_lea.vmem [#allocation9], %s327
          %s330 = ssub.s32 3072, 3072
          %331 = vsyncadd %s325, %s330
          %s332 = smul.addr %s32, 48
          %s333 = smul.addr %s332, 64
          %s334 = scalar_lea.hbm %s2, %s333
          %s335 = sshll.u32 %s328, 4
          %s336 = int_to_ptr.vmem [resolvable:$true] %s335
          %341 = dma.hbm_to_vmem [thread:$0]  %s334, 3072, %s336, %s325, 192, 192, 12
        $region28: #{tpu_custom_call.1} parent=15 // pred_fallthru
          _
        // Predicated region
        $region29: #{tpu_custom_call.1} parent=15 // pred_check
          %p342 = pneg %p146
        $region30: #{tpu_custom_call.1} parent=15 // pred_check_branch
          %344 = sbr.rel (%p342) target = $region32
        $region31: #{tpu_custom_call.1} parent=15 // pred_region
          %p345 = scmp.lt.s32.totalorder %s32, 1
          %s346 = scalar_select %p345, %s32, 1
          %s347 = smul.addr %s346, 3
          %s348 = scalar_lea.vmem %s3, %s347
        $region32: #{tpu_custom_call.1} parent=15 // pred_fallthru
          _
        // Predicated region
        $region33: #{tpu_custom_call.1} parent=15 // pred_check
          %p349 = pneg %p172
        $region34: #{tpu_custom_call.1} parent=15 // pred_check_branch
          %351 = sbr.rel (%p349) target = $region36
        $region35: #{tpu_custom_call.1} parent=15 // pred_region
          %s352 = sand.u32 %s162, 1
          %s353 = scalar_lea.sflag [#allocation11], %s352
          %s354 = sand.u32 %s162, 1
          %s355 = smul.addr %s354, 64
          %s356 = scalar_lea.vmem [#allocation10], %s355
          %s358 = ssub.s32 1024, 1024
          %359 = vsyncadd %s353, %s358
          %s360 = smul.addr %s32, 16
          %s361 = smul.addr %s360, 64
          %s362 = scalar_lea.hbm %s4, %s361
          %s363 = sshll.u32 %s356, 4
          %s364 = int_to_ptr.vmem [resolvable:$true] %s363
          %369 = dma.hbm_to_vmem [thread:$0]  %s362, 1024, %s364, %s353, 64, 64, 4
        $region36: #{tpu_custom_call.1} parent=15 // pred_fallthru
          _
        // Predicated region
        $region37: #{tpu_custom_call.1} parent=15 // pred_check
          %p370 = pneg %p198
        $region38: #{tpu_custom_call.1} parent=15 // pred_check_branch
          %372 = sbr.rel (%p370) target = $region40
        $region39: #{tpu_custom_call.1} parent=15 // pred_region
          %p373 = scmp.lt.s32.totalorder %s32, 1
          %s374 = scalar_select %p373, %s32, 1
          %s375 = scalar_lea.vmem %s5, %s374
        $region40: #{tpu_custom_call.1} parent=15 // pred_fallthru
          _
        // Predicated region
        $region41: #{tpu_custom_call.1} parent=15 // pred_check
          %p376 = pneg %p224
        $region42: #{tpu_custom_call.1} parent=15 // pred_check_branch
          %378 = sbr.rel (%p376) target = $region44
        $region43: #{tpu_custom_call.1} parent=15 // pred_region
          %p379 = scmp.lt.s32.totalorder %s32, 1
          %s380 = scalar_select %p379, %s32, 1
          %s381 = smul.addr %s380, 2
          %s382 = scalar_lea.vmem %s6, %s381
        $region44: #{tpu_custom_call.1} parent=15 // pred_fallthru
          _
      $region16: #{tpu_custom_call.1} parent=5 // pred_fallthru
        _
      %p383 = scmp.le.s32.totalorder 1, %s25
      %p384 = scmp.lt.s32.totalorder %s25, 9
      %p385 = pnand %p383, %p384
      %p386 = pneg %p385
      // Predicated region
      $region45: #{tpu_custom_call.1} parent=5 // pred_check
        _
      $region46: #{tpu_custom_call.1} parent=5 // pred_check_branch
        %388 = sbr.rel (%p385) target = $region48
      $region47: #{tpu_custom_call.1} parent=5 // pred_region
        %s389 = ssub.s32 %s25, 1
        %s390 = sand.u32 %s59, 1
        %s391 = scalar_lea.sflag [#allocation5], %s390
        %s392 = sand.u32 %s59, 1
        %s393 = smul.addr %s392, 16
        %s394 = scalar_lea.vmem [#allocation4], %s393
        // Predicated region
        $region49: #{tpu_custom_call.1} parent=47 // pred_check
          %p395 = pneg %p72
        $region50: #{tpu_custom_call.1} parent=47 // pred_check_branch
          %397 = sbr.rel (%p395) target = $region52
        $region51: #{tpu_custom_call.1} parent=47 // pred_region
          %398 = dma.done %s391, 256
        $region52: #{tpu_custom_call.1} parent=47 // pred_fallthru
          _
        %s399 = sand.u32 %s30, 1
        %s400 = scalar_lea.sflag [#allocation8], %s399
        %s401 = sand.u32 %s87, 1
        %s402 = scalar_lea.vmem [#allocation7], %s401
        // Predicated region
        $region53: #{tpu_custom_call.1} parent=47 // pred_check
          %p403 = pneg %p100
        $region54: #{tpu_custom_call.1} parent=47 // pred_check_branch
          %405 = sbr.rel (%p403) target = $region56
        $region55: #{tpu_custom_call.1} parent=47 // pred_region
          %406 = dma.done %s400, 16
        $region56: #{tpu_custom_call.1} parent=47 // pred_fallthru
          _
        %s407 = sand.u32 %s30, 1
        %s408 = scalar_lea.sflag [#allocation8], %s407
        %s409 = sand.u32 %s113, 1
        %s410 = smul.addr %s409, 192
        %s411 = scalar_lea.vmem [#allocation9], %s410
        // Predicated region
        $region57: #{tpu_custom_call.1} parent=47 // pred_check
          %p412 = pneg %p126
        $region58: #{tpu_custom_call.1} parent=47 // pred_check_branch
          %414 = sbr.rel (%p412) target = $region60
        $region59: #{tpu_custom_call.1} parent=47 // pred_region
          %415 = dma.done %s408, 3072
        $region60: #{tpu_custom_call.1} parent=47 // pred_fallthru
          _
        %s416 = sand.u32 %s165, 1
        %s417 = scalar_lea.sflag [#allocation11], %s416
        %s418 = sand.u32 %s165, 1
        %s419 = smul.addr %s418, 64
        %s420 = scalar_lea.vmem [#allocation10], %s419
        // Predicated region
        $region61: #{tpu_custom_call.1} parent=47 // pred_check
          %p421 = pneg %p178
        $region62: #{tpu_custom_call.1} parent=47 // pred_check_branch
          %423 = sbr.rel (%p421) target = $region64
        $region63: #{tpu_custom_call.1} parent=47 // pred_region
          %424 = dma.done %s417, 1024
        $region64: #{tpu_custom_call.1} parent=47 // pred_fallthru
          _
        %s425 = sand.u32 %s59, 1
        %s426 = scalar_lea.sflag [#allocation5], %s425
        %s427 = sand.u32 %s59, 1
        %s428 = smul.addr %s427, 16
        %s429 = scalar_lea.vmem [#allocation4], %s428
        %p430 = pneg %p72
        %p431 = pneg %p69
        %s432 = sand.u32 %s30, 1
        %s433 = scalar_lea.sflag [#allocation8], %s432
        %s434 = sand.u32 %s87, 1
        %s435 = scalar_lea.vmem [#allocation7], %s434
        %p436 = pneg %p100
        %p437 = pneg %p97
        %s438 = sand.u32 %s30, 1
        %s439 = scalar_lea.sflag [#allocation8], %s438
        %s440 = sand.u32 %s113, 1
        %s441 = smul.addr %s440, 192
        %s442 = scalar_lea.vmem [#allocation9], %s441
        %p443 = pneg %p126
        %p444 = pneg %p123
        %p445 = scmp.lt.s32.totalorder %s35, 1
        %s446 = scalar_select %p445, %s35, 1
        %s447 = smul.addr %s446, 3
        %s448 = scalar_lea.vmem %s3, %s447
        %p449 = pneg %p152
        %p450 = pneg %p149
        %s451 = sand.u32 %s165, 1
        %s452 = scalar_lea.sflag [#allocation11], %s451
        %s453 = sand.u32 %s165, 1
        %s454 = smul.addr %s453, 64
        %s455 = scalar_lea.vmem [#allocation10], %s454
        %p456 = pneg %p178
        %p457 = pneg %p175
        %p458 = scmp.lt.s32.totalorder %s35, 1
        %s459 = scalar_select %p458, %s35, 1
        %s460 = scalar_lea.vmem %s5, %s459
        %p461 = pneg %p204
        %p462 = pneg %p201
        %p463 = scmp.lt.s32.totalorder %s35, 1
        %s464 = scalar_select %p463, %s35, 1
        %s465 = smul.addr %s464, 2
        %s466 = scalar_lea.vmem %s6, %s465
        %p467 = pneg %p230
        %p468 = pneg %p227
        %p469 = pneg %p260
        %p470 = pneg %p257
        %s471 = sand.u32 %s247, 1
        %s472 = scalar_lea.sflag [#allocation6], %s471
        %s473 = sand.u32 %s247, 1
        %s474 = smul.addr %s473, 8
        %s475 = scalar_lea.vmem [#allocation12], %s474
        %p476 = scmp.lt.s32.totalorder %s35, 1
        %s477 = scalar_select %p476, %s35, 1
        %s478 = smul.addr %s477, 3
        %s479 = scalar_lea.vmem %s3, %s478
        %p480 = scmp.lt.s32.totalorder %s35, 1
        %s481 = scalar_select %p480, %s35, 1
        %s482 = scalar_lea.vmem %s5, %s481
        %p483 = scmp.lt.s32.totalorder %s35, 1
        %s484 = scalar_select %p483, %s35, 1
        %s485 = smul.addr %s484, 2
        %s486 = scalar_lea.vmem %s6, %s485
        %p488 = scmp.eq.s32.totalorder %s37, 0
        // Predicated region
        $region65: #{tpu_custom_call.1} parent=47 // pred_check
          %p489 = pneg %p488
        $region66: #{tpu_custom_call.1} parent=47 // pred_check_branch
          %491 = sbr.rel (%p489) target = $region68
        $region67: #{tpu_custom_call.1} parent=47 // pred_region
          %v492 = vld [vmem:[%s394] sm:$0xff]
          %v493 = vld [vmem:[%s394 + $0x8] sm:$0xff]
          %v494 = vpack.c.bf16 %v493, %v492
          %v495 = vld [vmem:[%s411 + $0x4] sm:$0xff]
          %v496 = vld [vmem:[%s411 + $0x10] sm:$0xff]
          %v497 = vld [vmem:[%s411 + $0x1c] sm:$0xff]
          %v498 = vld [vmem:[%s411 + $0x28] sm:$0xff]
          %v499 = vld [vmem:[%s411 + $0x34] sm:$0xff]
          %v500 = vld [vmem:[%s411 + $0x40] sm:$0xff]
          %v501 = vld [vmem:[%s411 + $0x4c] sm:$0xff]
          %v502 = vld [vmem:[%s411 + $0x58] sm:$0xff]
          %v503 = vld [vmem:[%s411 + $0x64] sm:$0xff]
          %v504 = vld [vmem:[%s411 + $0x70] sm:$0xff]
          %v505 = vld [vmem:[%s411 + $0x7c] sm:$0xff]
          %v506 = vld [vmem:[%s411 + $0x88] sm:$0xff]
          %v507 = vld [vmem:[%s411 + $0x94] sm:$0xff]
          %v508 = vld [vmem:[%s411 + $0xa0] sm:$0xff]
          %v509 = vld [vmem:[%s411 + $0xac] sm:$0xff]
          %v510 = vld [vmem:[%s411 + $0xb8] sm:$0xff]
          %v511 = vld [vmem:[%s479 + $0x1] sm:$0x3]
          %v513 = vlaneseq
          %v514 = vshrl.u32 %v513, 7
          %v515 = vsub.s32 0, %v514
          %v516 = vrot.slane %v511, %v515
          %v517 = vlaneseq
          %v518 = vshrl.u32 %v517, 7
          %v519 = vsub.s32 1, %v518
          %v520 = vrot.slane %v511, %v519
          %v539 = vunpack.c.l.b16 %v495
          %v540 = vunpack.c.h.b16 %v495
          %v541 = vunpack.c.l.b16 %v496
          %v542 = vunpack.c.h.b16 %v496
          %v543 = vunpack.c.l.b16 %v497
          %v544 = vunpack.c.h.b16 %v497
          %v545 = vunpack.c.l.b16 %v498
          %v546 = vunpack.c.h.b16 %v498
          %v547 = vunpack.c.l.b16 %v499
          %v548 = vunpack.c.h.b16 %v499
          %v549 = vunpack.c.l.b16 %v500
          %v550 = vunpack.c.h.b16 %v500
          %v551 = vunpack.c.l.b16 %v501
          %v552 = vunpack.c.h.b16 %v501
          %v553 = vunpack.c.l.b16 %v502
          %v554 = vunpack.c.h.b16 %v502
          %v555 = vunpack.c.l.b16 %v503
          %v556 = vunpack.c.h.b16 %v503
          %v557 = vunpack.c.l.b16 %v504
          %v558 = vunpack.c.h.b16 %v504
          %v559 = vunpack.c.l.b16 %v505
          %v560 = vunpack.c.h.b16 %v505
          %v561 = vunpack.c.l.b16 %v506
          %v562 = vunpack.c.h.b16 %v506
          %v563 = vunpack.c.l.b16 %v507
          %v564 = vunpack.c.h.b16 %v507
          %v565 = vunpack.c.l.b16 %v508
          %v566 = vunpack.c.h.b16 %v508
          %v567 = vunpack.c.l.b16 %v509
          %v568 = vunpack.c.h.b16 %v509
          %v569 = vunpack.c.l.b16 %v510
          %v570 = vunpack.c.h.b16 %v510
          %v571 = vpack.c.b16 %v541, %v539
          %v572 = vpack.c.b16 %v542, %v540
          %v573 = vpack.c.b16 %v545, %v543
          %v574 = vpack.c.b16 %v546, %v544
          %v575 = vpack.c.b16 %v549, %v547
          %v576 = vpack.c.b16 %v550, %v548
          %v577 = vpack.c.b16 %v553, %v551
          %v578 = vpack.c.b16 %v554, %v552
          %v579 = vpack.c.b16 %v557, %v555
          %v580 = vpack.c.b16 %v558, %v556
          %v581 = vpack.c.b16 %v561, %v559
          %v582 = vpack.c.b16 %v562, %v560
          %v583 = vpack.c.b16 %v565, %v563
          %v584 = vpack.c.b16 %v566, %v564
          %v585 = vpack.c.b16 %v569, %v567
          %v586 = vpack.c.b16 %v570, %v568
          %603 = vmatprep.subr.bf16.mxu0 %v572
          %604 = vmatpush1.bf16.msra.mxu0 %v571
          %605 = vmatprep.subr.bf16.mxu0 %v574
          %606 = vmatpush1.bf16.msra.mxu0 %v573
          %607 = vmatprep.subr.bf16.mxu0 %v576
          %608 = vmatpush1.bf16.msra.mxu0 %v575
          %609 = vmatprep.subr.bf16.mxu0 %v578
          %610 = vmatpush1.bf16.msra.mxu0 %v577
          %611 = vmatprep.subr.bf16.mxu0 %v580
          %612 = vmatpush1.bf16.msra.mxu0 %v579
          %613 = vmatprep.subr.bf16.mxu0 %v582
          %614 = vmatpush1.bf16.msra.mxu0 %v581
          %615 = vmatprep.subr.bf16.mxu0 %v584
          %616 = vmatpush1.bf16.msra.mxu0 %v583
          %617 = vmatprep.subr.bf16.mxu0 %v586
          %618 = vmatpush1.bf16.msra.mxu0 %v585
          %619 = vmatprep.subr.bf16.mxu0 0
          %620 = vmatpush1.bf16.msra.mxu0 0
          %621 = vmatprep.subr.bf16.mxu0 0
          %622 = vmatpush1.bf16.msra.mxu0 0
          %623 = vmatprep.subr.bf16.mxu0 0
          %624 = vmatpush1.bf16.msra.mxu0 0
          %625 = vmatprep.subr.bf16.mxu0 0
          %626 = vmatpush1.bf16.msra.mxu0 0
          %627 = vmatprep.subr.bf16.mxu0 0
          %628 = vmatpush1.bf16.msra.mxu0 0
          %629 = vmatprep.subr.bf16.mxu0 0
          %630 = vmatpush1.bf16.msra.mxu0 0
          %631 = vmatprep.subr.bf16.mxu0 0
          %632 = vmatpush1.bf16.msra.mxu0 0
          %633 = vmatprep.subr.bf16.mxu0 0
          %634 = vmatpush1.bf16.msra.mxu0 0
          %635 = vmatprep.mubr.bf16.mxu0 0
          %636 = vmatmul.mubr.bf16.gmra.mrb[0].mxu0 %v494
          %v637 = vpop.f32.mrb[0].mxu0
          %v638 = vadd.f32 %v516, %v637
          %v639 = vpop.f32.mrb[0].mxu0
          %v640 = vadd.f32 %v520, %v639
          %v641 = vpop.f32.mrb[0].mxu0
          %v642 = vadd.f32 %v516, %v641
          %v643 = vpop.f32.mrb[0].mxu0
          %v644 = vadd.f32 %v520, %v643
          %645 = vdwg.mxu0
          %648 = vrot.lane.b32.xlu0 %v638, 96
          %v649 = vpop.permute.xlu0 %648
          %650 = vrot.lane.b32.xlu0 %v642, 96
          %v651 = vpop.permute.xlu0 %650
          %654 = vrot.lane.b32.xlu0 %v638, 64
          %v655 = vpop.permute.xlu0 %654
          %656 = vrot.lane.b32.xlu0 %v642, 64
          %v657 = vpop.permute.xlu0 %656
          %660 = vrot.lane.b32.xlu0 %v638, 32
          %v661 = vpop.permute.xlu0 %660
          %662 = vrot.lane.b32.xlu0 %v642, 32
          %v663 = vpop.permute.xlu0 %662
          %v666 = vcombine.low %v638, %v655
          %v667 = vcombine.high %v638, %v655
          %v669 = vunpack.c.l.s4 1983009808
          %v670 = vunpack.c.0.s8 %v669
          %v671 = vlaneseq
          %v672 = vshrl.u32 %v671, 7
          %v673 = vsub.s32 %v670, %v672
          %v674 = vrot.slane %v666, %v673
          %v676 = vunpack.c.l.s4 1983009808
          %v677 = vunpack.c.0.s8 %v676
          %v678 = vlaneseq
          %v679 = vshrl.u32 %v678, 7
          %v680 = vsub.s32 %v677, %v679
          %v681 = vrot.slane %v667, %v680
          %v682 = vcombine.low %v649, %v661
          %v683 = vcombine.high %v649, %v661
          %v685 = vunpack.c.l.s4 1983009808
          %v686 = vunpack.c.0.s8 %v685
          %v687 = vlaneseq
          %v688 = vshrl.u32 %v687, 7
          %v689 = vsub.s32 %v686, %v688
          %v690 = vrot.slane %v682, %v689
          %v692 = vunpack.c.l.s4 1983009808
          %v693 = vunpack.c.0.s8 %v692
          %v694 = vlaneseq
          %v695 = vshrl.u32 %v694, 7
          %v696 = vsub.s32 %v693, %v695
          %v697 = vrot.slane %v683, %v696
          %v698 = vcombine.low %v674, %v690
          %v699 = vcombine.high %v674, %v690
          %v701 = vunpack.c.l.s4 1934713408
          %v702 = vunpack.c.0.s8 %v701
          %v703 = vlaneseq
          %v704 = vshrl.u32 %v703, 7
          %v705 = vsub.s32 %v702, %v704
          %v706 = vrot.slane %v698, %v705
          %v708 = vunpack.c.l.s4 1934713408
          %v709 = vunpack.c.0.s8 %v708
          %v710 = vlaneseq
          %v711 = vshrl.u32 %v710, 7
          %v712 = vsub.s32 %v709, %v711
          %v713 = vrot.slane %v699, %v712
          %v714 = vcombine.low %v681, %v697
          %v715 = vcombine.high %v681, %v697
          %v717 = vunpack.c.l.s4 1934713408
          %v718 = vunpack.c.0.s8 %v717
          %v719 = vlaneseq
          %v720 = vshrl.u32 %v719, 7
          %v721 = vsub.s32 %v718, %v720
          %v722 = vrot.slane %v714, %v721
          %v724 = vunpack.c.l.s4 1934713408
          %v725 = vunpack.c.0.s8 %v724
          %v726 = vlaneseq
          %v727 = vshrl.u32 %v726, 7
          %v728 = vsub.s32 %v725, %v727
          %v729 = vrot.slane %v715, %v728
          %v730 = vcombine.high %v706, 0.0
          %v731 = vcombine.high %v713, 0.0
          %v732 = vcombine.high %v722, 0.0
          %v733 = vcombine.high %v729, 0.0
          %v734 = vcombine.low %v642, %v657
          %v735 = vcombine.high %v642, %v657
          %v737 = vunpack.c.l.s4 1983009808
          %v738 = vunpack.c.0.s8 %v737
          %v739 = vlaneseq
          %v740 = vshrl.u32 %v739, 7
          %v741 = vsub.s32 %v738, %v740
          %v742 = vrot.slane %v734, %v741
          %v744 = vunpack.c.l.s4 1983009808
          %v745 = vunpack.c.0.s8 %v744
          %v746 = vlaneseq
          %v747 = vshrl.u32 %v746, 7
          %v748 = vsub.s32 %v745, %v747
          %v749 = vrot.slane %v735, %v748
          %v750 = vcombine.low %v651, %v663
          %v751 = vcombine.high %v651, %v663
          %v753 = vunpack.c.l.s4 1983009808
          %v754 = vunpack.c.0.s8 %v753
          %v755 = vlaneseq
          %v756 = vshrl.u32 %v755, 7
          %v757 = vsub.s32 %v754, %v756
          %v758 = vrot.slane %v750, %v757
          %v760 = vunpack.c.l.s4 1983009808
          %v761 = vunpack.c.0.s8 %v760
          %v762 = vlaneseq
          %v763 = vshrl.u32 %v762, 7
          %v764 = vsub.s32 %v761, %v763
          %v765 = vrot.slane %v751, %v764
          %v766 = vcombine.low %v742, %v758
          %v767 = vcombine.high %v742, %v758
          %v769 = vunpack.c.l.s4 1934713408
          %v770 = vunpack.c.0.s8 %v769
          %v771 = vlaneseq
          %v772 = vshrl.u32 %v771, 7
          %v773 = vsub.s32 %v770, %v772
          %v774 = vrot.slane %v766, %v773
          %v776 = vunpack.c.l.s4 1934713408
          %v777 = vunpack.c.0.s8 %v776
          %v778 = vlaneseq
          %v779 = vshrl.u32 %v778, 7
          %v780 = vsub.s32 %v777, %v779
          %v781 = vrot.slane %v767, %v780
          %v782 = vcombine.low %v749, %v765
          %v783 = vcombine.high %v749, %v765
          %v785 = vunpack.c.l.s4 1934713408
          %v786 = vunpack.c.0.s8 %v785
          %v787 = vlaneseq
          %v788 = vshrl.u32 %v787, 7
          %v789 = vsub.s32 %v786, %v788
          %v790 = vrot.slane %v782, %v789
          %v792 = vunpack.c.l.s4 1934713408
          %v793 = vunpack.c.0.s8 %v792
          %v794 = vlaneseq
          %v795 = vshrl.u32 %v794, 7
          %v796 = vsub.s32 %v793, %v795
          %v797 = vrot.slane %v783, %v796
          %v798 = vcombine.high %v774, 0.0
          %v799 = vcombine.high %v781, 0.0
          %v800 = vcombine.high %v790, 0.0
          %v801 = vcombine.high %v797, 0.0
          %v802 = vcombine.low %v706, %v713
          %v804 = vunpack.c.l.s4 1983009808
          %v805 = vunpack.c.0.s8 %v804
          %v806 = vlaneseq
          %v807 = vshrl.u32 %v806, 7
          %v808 = vsub.s32 %v805, %v807
          %v809 = vrot.slane %v802, %v808
          %v810 = vcombine.low %v730, %v731
          %v812 = vunpack.c.l.s4 1983009808
          %v813 = vunpack.c.0.s8 %v812
          %v814 = vlaneseq
          %v815 = vshrl.u32 %v814, 7
          %v816 = vsub.s32 %v813, %v815
          %v817 = vrot.slane %v810, %v816
          %v818 = vcombine.low %v722, %v729
          %v820 = vunpack.c.l.s4 1983009808
          %v821 = vunpack.c.0.s8 %v820
          %v822 = vlaneseq
          %v823 = vshrl.u32 %v822, 7
          %v824 = vsub.s32 %v821, %v823
          %v825 = vrot.slane %v818, %v824
          %v826 = vcombine.low %v732, %v733
          %v828 = vunpack.c.l.s4 1983009808
          %v829 = vunpack.c.0.s8 %v828
          %v830 = vlaneseq
          %v831 = vshrl.u32 %v830, 7
          %v832 = vsub.s32 %v829, %v831
          %v833 = vrot.slane %v826, %v832
          %v834 = vcombine.low %v809, %v817
          %v835 = vcombine.high %v809, %v817
          %v837 = vunpack.c.l.s4 1934713408
          %v838 = vunpack.c.0.s8 %v837
          %v839 = vlaneseq
          %v840 = vshrl.u32 %v839, 7
          %v841 = vsub.s32 %v838, %v840
          %v842 = vrot.slane %v834, %v841
          %v844 = vunpack.c.l.s4 1934713408
          %v845 = vunpack.c.0.s8 %v844
          %v846 = vlaneseq
          %v847 = vshrl.u32 %v846, 7
          %v848 = vsub.s32 %v845, %v847
          %v849 = vrot.slane %v835, %v848
          %v850 = vcombine.low %v825, %v833
          %v851 = vcombine.high %v825, %v833
          %v853 = vunpack.c.l.s4 1934713408
          %v854 = vunpack.c.0.s8 %v853
          %v855 = vlaneseq
          %v856 = vshrl.u32 %v855, 7
          %v857 = vsub.s32 %v854, %v856
          %v858 = vrot.slane %v850, %v857
          %v860 = vunpack.c.l.s4 1934713408
          %v861 = vunpack.c.0.s8 %v860
          %v862 = vlaneseq
          %v863 = vshrl.u32 %v862, 7
          %v864 = vsub.s32 %v861, %v863
          %v865 = vrot.slane %v851, %v864
          %v866 = vcombine.low %v842, %v858
          %v867 = vcombine.high %v842, %v858
          %v868 = vcombine.low %v849, %v865
          %v869 = vcombine.high %v849, %v865
          %v870 = vcombine.low %v774, %v781
          %v872 = vunpack.c.l.s4 1983009808
          %v873 = vunpack.c.0.s8 %v872
          %v874 = vlaneseq
          %v875 = vshrl.u32 %v874, 7
          %v876 = vsub.s32 %v873, %v875
          %v877 = vrot.slane %v870, %v876
          %v878 = vcombine.low %v798, %v799
          %v880 = vunpack.c.l.s4 1983009808
          %v881 = vunpack.c.0.s8 %v880
          %v882 = vlaneseq
          %v883 = vshrl.u32 %v882, 7
          %v884 = vsub.s32 %v881, %v883
          %v885 = vrot.slane %v878, %v884
          %v886 = vcombine.low %v790, %v797
          %v888 = vunpack.c.l.s4 1983009808
          %v889 = vunpack.c.0.s8 %v888
          %v890 = vlaneseq
          %v891 = vshrl.u32 %v890, 7
          %v892 = vsub.s32 %v889, %v891
          %v893 = vrot.slane %v886, %v892
          %v894 = vcombine.low %v800, %v801
          %v896 = vunpack.c.l.s4 1983009808
          %v897 = vunpack.c.0.s8 %v896
          %v898 = vlaneseq
          %v899 = vshrl.u32 %v898, 7
          %v900 = vsub.s32 %v897, %v899
          %v901 = vrot.slane %v894, %v900
          %v902 = vcombine.low %v877, %v885
          %v903 = vcombine.high %v877, %v885
          %v905 = vunpack.c.l.s4 1934713408
          %v906 = vunpack.c.0.s8 %v905
          %v907 = vlaneseq
          %v908 = vshrl.u32 %v907, 7
          %v909 = vsub.s32 %v906, %v908
          %v910 = vrot.slane %v902, %v909
          %v912 = vunpack.c.l.s4 1934713408
          %v913 = vunpack.c.0.s8 %v912
          %v914 = vlaneseq
          %v915 = vshrl.u32 %v914, 7
          %v916 = vsub.s32 %v913, %v915
          %v917 = vrot.slane %v903, %v916
          %v918 = vcombine.low %v893, %v901
          %v919 = vcombine.high %v893, %v901
          %v921 = vunpack.c.l.s4 1934713408
          %v922 = vunpack.c.0.s8 %v921
          %v923 = vlaneseq
          %v924 = vshrl.u32 %v923, 7
          %v925 = vsub.s32 %v922, %v924
          %v926 = vrot.slane %v918, %v925
          %v928 = vunpack.c.l.s4 1934713408
          %v929 = vunpack.c.0.s8 %v928
          %v930 = vlaneseq
          %v931 = vshrl.u32 %v930, 7
          %v932 = vsub.s32 %v929, %v931
          %v933 = vrot.slane %v919, %v932
          %v934 = vcombine.low %v910, %v926
          %v935 = vcombine.high %v910, %v926
          %v936 = vcombine.low %v917, %v933
          %v937 = vcombine.high %v917, %v933
          %v938 = vpack.c.bf16 %v934, %v866
          %v939 = vpack.c.bf16 %v935, %v867
          %v940 = vpack.c.bf16 %v936, %v868
          %v941 = vpack.c.bf16 %v937, %v869
          %vm942 = vcmask 261120
          %943 = vst.msk [vmem:[#allocation2] sm:$0xff] %vm942, %v938
          %944 = vst.msk [vmem:[#allocation2 + $0x8] sm:$0xff] %vm942, %v939
          %945 = vst.msk [vmem:[#allocation2 + $0x10] sm:$0xff] %vm942, %v940
          %946 = vst.msk [vmem:[#allocation2 + $0x18] sm:$0xff] %vm942, %v941
          %949 = vrot.lane.b32.xlu0 %v640, 96
          %v950 = vpop.permute.xlu0 %949
          %951 = vrot.lane.b32.xlu0 %v644, 96
          %v952 = vpop.permute.xlu0 %951
          %955 = vrot.lane.b32.xlu0 %v640, 64
          %v956 = vpop.permute.xlu0 %955
          %957 = vrot.lane.b32.xlu0 %v644, 64
          %v958 = vpop.permute.xlu0 %957
          %961 = vrot.lane.b32.xlu0 %v640, 32
          %v962 = vpop.permute.xlu0 %961
          %963 = vrot.lane.b32.xlu0 %v644, 32
          %v964 = vpop.permute.xlu0 %963
          %v967 = vcombine.low %v640, %v956
          %v968 = vcombine.high %v640, %v956
          %v970 = vunpack.c.l.s4 1983009808
          %v971 = vunpack.c.0.s8 %v970
          %v972 = vlaneseq
          %v973 = vshrl.u32 %v972, 7
          %v974 = vsub.s32 %v971, %v973
          %v975 = vrot.slane %v967, %v974
          %v977 = vunpack.c.l.s4 1983009808
          %v978 = vunpack.c.0.s8 %v977
          %v979 = vlaneseq
          %v980 = vshrl.u32 %v979, 7
          %v981 = vsub.s32 %v978, %v980
          %v982 = vrot.slane %v968, %v981
          %v983 = vcombine.low %v950, %v962
          %v984 = vcombine.high %v950, %v962
          %v986 = vunpack.c.l.s4 1983009808
          %v987 = vunpack.c.0.s8 %v986
          %v988 = vlaneseq
          %v989 = vshrl.u32 %v988, 7
          %v990 = vsub.s32 %v987, %v989
          %v991 = vrot.slane %v983, %v990
          %v993 = vunpack.c.l.s4 1983009808
          %v994 = vunpack.c.0.s8 %v993
          %v995 = vlaneseq
          %v996 = vshrl.u32 %v995, 7
          %v997 = vsub.s32 %v994, %v996
          %v998 = vrot.slane %v984, %v997
          %v999 = vcombine.low %v975, %v991
          %v1000 = vcombine.high %v975, %v991
          %v1002 = vunpack.c.l.s4 1934713408
          %v1003 = vunpack.c.0.s8 %v1002
          %v1004 = vlaneseq
          %v1005 = vshrl.u32 %v1004, 7
          %v1006 = vsub.s32 %v1003, %v1005
          %v1007 = vrot.slane %v999, %v1006
          %v1009 = vunpack.c.l.s4 1934713408
          %v1010 = vunpack.c.0.s8 %v1009
          %v1011 = vlaneseq
          %v1012 = vshrl.u32 %v1011, 7
          %v1013 = vsub.s32 %v1010, %v1012
          %v1014 = vrot.slane %v1000, %v1013
          %v1015 = vcombine.low %v982, %v998
          %v1016 = vcombine.high %v982, %v998
          %v1018 = vunpack.c.l.s4 1934713408
          %v1019 = vunpack.c.0.s8 %v1018
          %v1020 = vlaneseq
          %v1021 = vshrl.u32 %v1020, 7
          %v1022 = vsub.s32 %v1019, %v1021
          %v1023 = vrot.slane %v1015, %v1022
          %v1025 = vunpack.c.l.s4 1934713408
          %v1026 = vunpack.c.0.s8 %v1025
          %v1027 = vlaneseq
          %v1028 = vshrl.u32 %v1027, 7
          %v1029 = vsub.s32 %v1026, %v1028
          %v1030 = vrot.slane %v1016, %v1029
          %v1031 = vcombine.high %v1007, 0.0
          %v1032 = vcombine.high %v1014, 0.0
          %v1033 = vcombine.high %v1023, 0.0
          %v1034 = vcombine.high %v1030, 0.0
          %v1035 = vcombine.low %v644, %v958
          %v1036 = vcombine.high %v644, %v958
          %v1038 = vunpack.c.l.s4 1983009808
          %v1039 = vunpack.c.0.s8 %v1038
          %v1040 = vlaneseq
          %v1041 = vshrl.u32 %v1040, 7
          %v1042 = vsub.s32 %v1039, %v1041
          %v1043 = vrot.slane %v1035, %v1042
          %v1045 = vunpack.c.l.s4 1983009808
          %v1046 = vunpack.c.0.s8 %v1045
          %v1047 = vlaneseq
          %v1048 = vshrl.u32 %v1047, 7
          %v1049 = vsub.s32 %v1046, %v1048
          %v1050 = vrot.slane %v1036, %v1049
          %v1051 = vcombine.low %v952, %v964
          %v1052 = vcombine.high %v952, %v964
          %v1054 = vunpack.c.l.s4 1983009808
          %v1055 = vunpack.c.0.s8 %v1054
          %v1056 = vlaneseq
          %v1057 = vshrl.u32 %v1056, 7
          %v1058 = vsub.s32 %v1055, %v1057
          %v1059 = vrot.slane %v1051, %v1058
          %v1061 = vunpack.c.l.s4 1983009808
          %v1062 = vunpack.c.0.s8 %v1061
          %v1063 = vlaneseq
          %v1064 = vshrl.u32 %v1063, 7
          %v1065 = vsub.s32 %v1062, %v1064
          %v1066 = vrot.slane %v1052, %v1065
          %v1067 = vcombine.low %v1043, %v1059
          %v1068 = vcombine.high %v1043, %v1059
          %v1070 = vunpack.c.l.s4 1934713408
          %v1071 = vunpack.c.0.s8 %v1070
          %v1072 = vlaneseq
          %v1073 = vshrl.u32 %v1072, 7
          %v1074 = vsub.s32 %v1071, %v1073
          %v1075 = vrot.slane %v1067, %v1074
          %v1077 = vunpack.c.l.s4 1934713408
          %v1078 = vunpack.c.0.s8 %v1077
          %v1079 = vlaneseq
          %v1080 = vshrl.u32 %v1079, 7
          %v1081 = vsub.s32 %v1078, %v1080
          %v1082 = vrot.slane %v1068, %v1081
          %v1083 = vcombine.low %v1050, %v1066
          %v1084 = vcombine.high %v1050, %v1066
          %v1086 = vunpack.c.l.s4 1934713408
          %v1087 = vunpack.c.0.s8 %v1086
          %v1088 = vlaneseq
          %v1089 = vshrl.u32 %v1088, 7
          %v1090 = vsub.s32 %v1087, %v1089
          %v1091 = vrot.slane %v1083, %v1090
          %v1093 = vunpack.c.l.s4 1934713408
          %v1094 = vunpack.c.0.s8 %v1093
          %v1095 = vlaneseq
          %v1096 = vshrl.u32 %v1095, 7
          %v1097 = vsub.s32 %v1094, %v1096
          %v1098 = vrot.slane %v1084, %v1097
          %v1099 = vcombine.high %v1075, 0.0
          %v1100 = vcombine.high %v1082, 0.0
          %v1101 = vcombine.high %v1091, 0.0
          %v1102 = vcombine.high %v1098, 0.0
          %v1103 = vcombine.low %v1007, %v1014
          %v1105 = vunpack.c.l.s4 1983009808
          %v1106 = vunpack.c.0.s8 %v1105
          %v1107 = vlaneseq
          %v1108 = vshrl.u32 %v1107, 7
          %v1109 = vsub.s32 %v1106, %v1108
          %v1110 = vrot.slane %v1103, %v1109
          %v1111 = vcombine.low %v1031, %v1032
          %v1113 = vunpack.c.l.s4 1983009808
          %v1114 = vunpack.c.0.s8 %v1113
          %v1115 = vlaneseq
          %v1116 = vshrl.u32 %v1115, 7
          %v1117 = vsub.s32 %v1114, %v1116
          %v1118 = vrot.slane %v1111, %v1117
          %v1119 = vcombine.low %v1023, %v1030
          %v1121 = vunpack.c.l.s4 1983009808
          %v1122 = vunpack.c.0.s8 %v1121
          %v1123 = vlaneseq
          %v1124 = vshrl.u32 %v1123, 7
          %v1125 = vsub.s32 %v1122, %v1124
          %v1126 = vrot.slane %v1119, %v1125
          %v1127 = vcombine.low %v1033, %v1034
          %v1129 = vunpack.c.l.s4 1983009808
          %v1130 = vunpack.c.0.s8 %v1129
          %v1131 = vlaneseq
          %v1132 = vshrl.u32 %v1131, 7
          %v1133 = vsub.s32 %v1130, %v1132
          %v1134 = vrot.slane %v1127, %v1133
          %v1135 = vcombine.low %v1110, %v1118
          %v1136 = vcombine.high %v1110, %v1118
          %v1138 = vunpack.c.l.s4 1934713408
          %v1139 = vunpack.c.0.s8 %v1138
          %v1140 = vlaneseq
          %v1141 = vshrl.u32 %v1140, 7
          %v1142 = vsub.s32 %v1139, %v1141
          %v1143 = vrot.slane %v1135, %v1142
          %v1145 = vunpack.c.l.s4 1934713408
          %v1146 = vunpack.c.0.s8 %v1145
          %v1147 = vlaneseq
          %v1148 = vshrl.u32 %v1147, 7
          %v1149 = vsub.s32 %v1146, %v1148
          %v1150 = vrot.slane %v1136, %v1149
          %v1151 = vcombine.low %v1126, %v1134
          %v1152 = vcombine.high %v1126, %v1134
          %v1154 = vunpack.c.l.s4 1934713408
          %v1155 = vunpack.c.0.s8 %v1154
          %v1156 = vlaneseq
          %v1157 = vshrl.u32 %v1156, 7
          %v1158 = vsub.s32 %v1155, %v1157
          %v1159 = vrot.slane %v1151, %v1158
          %v1161 = vunpack.c.l.s4 1934713408
          %v1162 = vunpack.c.0.s8 %v1161
          %v1163 = vlaneseq
          %v1164 = vshrl.u32 %v1163, 7
          %v1165 = vsub.s32 %v1162, %v1164
          %v1166 = vrot.slane %v1152, %v1165
          %v1167 = vcombine.low %v1143, %v1159
          %v1168 = vcombine.high %v1143, %v1159
          %v1169 = vcombine.low %v1150, %v1166
          %v1170 = vcombine.high %v1150, %v1166
          %v1171 = vcombine.low %v1075, %v1082
          %v1173 = vunpack.c.l.s4 1983009808
          %v1174 = vunpack.c.0.s8 %v1173
          %v1175 = vlaneseq
          %v1176 = vshrl.u32 %v1175, 7
          %v1177 = vsub.s32 %v1174, %v1176
          %v1178 = vrot.slane %v1171, %v1177
          %v1179 = vcombine.low %v1099, %v1100
          %v1181 = vunpack.c.l.s4 1983009808
          %v1182 = vunpack.c.0.s8 %v1181
          %v1183 = vlaneseq
          %v1184 = vshrl.u32 %v1183, 7
          %v1185 = vsub.s32 %v1182, %v1184
          %v1186 = vrot.slane %v1179, %v1185
          %v1187 = vcombine.low %v1091, %v1098
          %v1189 = vunpack.c.l.s4 1983009808
          %v1190 = vunpack.c.0.s8 %v1189
          %v1191 = vlaneseq
          %v1192 = vshrl.u32 %v1191, 7
          %v1193 = vsub.s32 %v1190, %v1192
          %v1194 = vrot.slane %v1187, %v1193
          %v1195 = vcombine.low %v1101, %v1102
          %v1197 = vunpack.c.l.s4 1983009808
          %v1198 = vunpack.c.0.s8 %v1197
          %v1199 = vlaneseq
          %v1200 = vshrl.u32 %v1199, 7
          %v1201 = vsub.s32 %v1198, %v1200
          %v1202 = vrot.slane %v1195, %v1201
          %v1203 = vcombine.low %v1178, %v1186
          %v1204 = vcombine.high %v1178, %v1186
          %v1206 = vunpack.c.l.s4 1934713408
          %v1207 = vunpack.c.0.s8 %v1206
          %v1208 = vlaneseq
          %v1209 = vshrl.u32 %v1208, 7
          %v1210 = vsub.s32 %v1207, %v1209
          %v1211 = vrot.slane %v1203, %v1210
          %v1213 = vunpack.c.l.s4 1934713408
          %v1214 = vunpack.c.0.s8 %v1213
          %v1215 = vlaneseq
          %v1216 = vshrl.u32 %v1215, 7
          %v1217 = vsub.s32 %v1214, %v1216
          %v1218 = vrot.slane %v1204, %v1217
          %v1219 = vcombine.low %v1194, %v1202
          %v1220 = vcombine.high %v1194, %v1202
          %v1222 = vunpack.c.l.s4 1934713408
          %v1223 = vunpack.c.0.s8 %v1222
          %v1224 = vlaneseq
          %v1225 = vshrl.u32 %v1224, 7
          %v1226 = vsub.s32 %v1223, %v1225
          %v1227 = vrot.slane %v1219, %v1226
          %v1229 = vunpack.c.l.s4 1934713408
          %v1230 = vunpack.c.0.s8 %v1229
          %v1231 = vlaneseq
          %v1232 = vshrl.u32 %v1231, 7
          %v1233 = vsub.s32 %v1230, %v1232
          %v1234 = vrot.slane %v1220, %v1233
          %v1235 = vcombine.low %v1211, %v1227
          %v1236 = vcombine.high %v1211, %v1227
          %v1237 = vcombine.low %v1218, %v1234
          %v1238 = vcombine.high %v1218, %v1234
          %v1239 = vpack.c.bf16 %v1235, %v1167
          %v1240 = vpack.c.bf16 %v1236, %v1168
          %v1241 = vpack.c.bf16 %v1237, %v1169
          %v1242 = vpack.c.bf16 %v1238, %v1170
          %1243 = vst.msk [vmem:[#allocation3] sm:$0xff] %vm942, %v1239
          %1244 = vst.msk [vmem:[#allocation3 + $0x8] sm:$0xff] %vm942, %v1240
          %1245 = vst.msk [vmem:[#allocation3 + $0x10] sm:$0xff] %vm942, %v1241
          %1246 = vst.msk [vmem:[#allocation3 + $0x18] sm:$0xff] %vm942, %v1242
        $region68: #{tpu_custom_call.1} parent=47 // pred_fallthru
          _
        %s1247 = smul.u32 %s37, 8
        %s1248 = scalar_lea.vmem %s394, %s1247 [#allocation4]
        %v1249 = vld [vmem:[%s1248] sm:$0xff]
        %v1250 = vpack.c.bf16 %v1249, %v1249
        %v1251 = vld [vmem:[%s411] sm:$0xf]
        %v1252 = vld [vmem:[%s411 + $0xc] sm:$0xf]
        %v1253 = vld [vmem:[%s411 + $0x18] sm:$0xf]
        %v1254 = vld [vmem:[%s411 + $0x24] sm:$0xf]
        %v1255 = vld [vmem:[%s411 + $0x30] sm:$0xf]
        %v1256 = vld [vmem:[%s411 + $0x3c] sm:$0xf]
        %v1257 = vld [vmem:[%s411 + $0x48] sm:$0xf]
        %v1258 = vld [vmem:[%s411 + $0x54] sm:$0xf]
        %v1259 = vld [vmem:[%s411 + $0x60] sm:$0xf]
        %v1260 = vld [vmem:[%s411 + $0x6c] sm:$0xf]
        %v1261 = vld [vmem:[%s411 + $0x78] sm:$0xf]
        %v1262 = vld [vmem:[%s411 + $0x84] sm:$0xf]
        %v1263 = vld [vmem:[%s411 + $0x90] sm:$0xf]
        %v1264 = vld [vmem:[%s411 + $0x9c] sm:$0xf]
        %v1265 = vld [vmem:[%s411 + $0xa8] sm:$0xf]
        %v1266 = vld [vmem:[%s411 + $0xb4] sm:$0xf]
        %v1267 = vld [vmem:[%s479] sm:$0x1]
        %v1269 = vlaneseq
        %v1270 = vshrl.u32 %v1269, 7
        %v1271 = vsub.s32 0, %v1270
        %v1272 = vrot.slane %v1267, %v1271
        %v1290 = vunpack.c.l.b16 %v1251
        %v1291 = vunpack.c.l.b16 %v1252
        %v1292 = vunpack.c.l.b16 %v1253
        %v1293 = vunpack.c.l.b16 %v1254
        %v1294 = vunpack.c.l.b16 %v1255
        %v1295 = vunpack.c.l.b16 %v1256
        %v1296 = vunpack.c.l.b16 %v1257
        %v1297 = vunpack.c.l.b16 %v1258
        %v1298 = vunpack.c.l.b16 %v1259
        %v1299 = vunpack.c.l.b16 %v1260
        %v1300 = vunpack.c.l.b16 %v1261
        %v1301 = vunpack.c.l.b16 %v1262
        %v1302 = vunpack.c.l.b16 %v1263
        %v1303 = vunpack.c.l.b16 %v1264
        %v1304 = vunpack.c.l.b16 %v1265
        %v1305 = vunpack.c.l.b16 %v1266
        %v1306 = vpack.c.b16 %v1291, %v1290
        %v1307 = vpack.c.b16 %v1293, %v1292
        %v1308 = vpack.c.b16 %v1295, %v1294
        %v1309 = vpack.c.b16 %v1297, %v1296
        %v1310 = vpack.c.b16 %v1299, %v1298
        %v1311 = vpack.c.b16 %v1301, %v1300
        %v1312 = vpack.c.b16 %v1303, %v1302
        %v1313 = vpack.c.b16 %v1305, %v1304
        %1322 = vmatprep.subr.bf16.mxu0 0
        %1323 = vmatpush1.bf16.msra.mxu0 %v1306
        %1324 = vmatprep.subr.bf16.mxu0 0
        %1325 = vmatpush1.bf16.msra.mxu0 %v1307
        %1326 = vmatprep.subr.bf16.mxu0 0
        %1327 = vmatpush1.bf16.msra.mxu0 %v1308
        %1328 = vmatprep.subr.bf16.mxu0 0
        %1329 = vmatpush1.bf16.msra.mxu0 %v1309
        %1330 = vmatprep.subr.bf16.mxu0 0
        %1331 = vmatpush1.bf16.msra.mxu0 %v1310
        %1332 = vmatprep.subr.bf16.mxu0 0
        %1333 = vmatpush1.bf16.msra.mxu0 %v1311
        %1334 = vmatprep.subr.bf16.mxu0 0
        %1335 = vmatpush1.bf16.msra.mxu0 %v1312
        %1336 = vmatprep.subr.bf16.mxu0 0
        %1337 = vmatpush1.bf16.msra.mxu0 %v1313
        %1338 = vmatprep.subr.bf16.mxu0 0
        %1339 = vmatpush1.bf16.msra.mxu0 0
        %1340 = vmatprep.subr.bf16.mxu0 0
        %1341 = vmatpush1.bf16.msra.mxu0 0
        %1342 = vmatprep.subr.bf16.mxu0 0
        %1343 = vmatpush1.bf16.msra.mxu0 0
        %1344 = vmatprep.subr.bf16.mxu0 0
        %1345 = vmatpush1.bf16.msra.mxu0 0
        %1346 = vmatprep.subr.bf16.mxu0 0
        %1347 = vmatpush1.bf16.msra.mxu0 0
        %1348 = vmatprep.subr.bf16.mxu0 0
        %1349 = vmatpush1.bf16.msra.mxu0 0
        %1350 = vmatprep.subr.bf16.mxu0 0
        %1351 = vmatpush1.bf16.msra.mxu0 0
        %1352 = vmatprep.subr.bf16.mxu0 0
        %1353 = vmatpush1.bf16.msra.mxu0 0
        %1354 = vmatprep.mubr.bf16.mxu0 0
        %1355 = vmatmul.mubr.bf16.gmra.mrb[0].mxu0 %v1250
        %v1356 = vpop.f32.mrb[0].mxu0
        %v1357 = vadd.f32 %v1272, %v1356
        %v1358 = vpop.f32.mrb[0].mxu0
        %v1359 = vpop.f32.mrb[0].mxu0
        %v1360 = vpop.f32.mrb[0].mxu0
        %1361 = vdwg.mxu0
        %v1362 = vmul.f32 %v1357, 0.17677669
        %1364 = vrot.lane.b32.xlu0 %v1362, 96
        %v1365 = vpop.permute.xlu0 %1364
        %1367 = vrot.lane.b32.xlu0 %v1362, 64
        %v1368 = vpop.permute.xlu0 %1367
        %1370 = vrot.lane.b32.xlu0 %v1362, 32
        %v1371 = vpop.permute.xlu0 %1370
        %v1373 = vcombine.low %v1362, %v1368
        %v1374 = vcombine.high %v1362, %v1368
        %v1376 = vunpack.c.l.s4 1983009808
        %v1377 = vunpack.c.0.s8 %v1376
        %v1378 = vlaneseq
        %v1379 = vshrl.u32 %v1378, 7
        %v1380 = vsub.s32 %v1377, %v1379
        %v1381 = vrot.slane %v1373, %v1380
        %v1383 = vunpack.c.l.s4 1983009808
        %v1384 = vunpack.c.0.s8 %v1383
        %v1385 = vlaneseq
        %v1386 = vshrl.u32 %v1385, 7
        %v1387 = vsub.s32 %v1384, %v1386
        %v1388 = vrot.slane %v1374, %v1387
        %v1389 = vcombine.low %v1365, %v1371
        %v1390 = vcombine.high %v1365, %v1371
        %v1392 = vunpack.c.l.s4 1983009808
        %v1393 = vunpack.c.0.s8 %v1392
        %v1394 = vlaneseq
        %v1395 = vshrl.u32 %v1394, 7
        %v1396 = vsub.s32 %v1393, %v1395
        %v1397 = vrot.slane %v1389, %v1396
        %v1399 = vunpack.c.l.s4 1983009808
        %v1400 = vunpack.c.0.s8 %v1399
        %v1401 = vlaneseq
        %v1402 = vshrl.u32 %v1401, 7
        %v1403 = vsub.s32 %v1400, %v1402
        %v1404 = vrot.slane %v1390, %v1403
        %v1405 = vcombine.low %v1381, %v1397
        %v1406 = vcombine.high %v1381, %v1397
        %v1408 = vunpack.c.l.s4 1934713408
        %v1409 = vunpack.c.0.s8 %v1408
        %v1410 = vlaneseq
        %v1411 = vshrl.u32 %v1410, 7
        %v1412 = vsub.s32 %v1409, %v1411
        %v1413 = vrot.slane %v1405, %v1412
        %v1415 = vunpack.c.l.s4 1934713408
        %v1416 = vunpack.c.0.s8 %v1415
        %v1417 = vlaneseq
        %v1418 = vshrl.u32 %v1417, 7
        %v1419 = vsub.s32 %v1416, %v1418
        %v1420 = vrot.slane %v1406, %v1419
        %v1421 = vcombine.low %v1388, %v1404
        %v1422 = vcombine.high %v1388, %v1404
        %v1424 = vunpack.c.l.s4 1934713408
        %v1425 = vunpack.c.0.s8 %v1424
        %v1426 = vlaneseq
        %v1427 = vshrl.u32 %v1426, 7
        %v1428 = vsub.s32 %v1425, %v1427
        %v1429 = vrot.slane %v1421, %v1428
        %v1431 = vunpack.c.l.s4 1934713408
        %v1432 = vunpack.c.0.s8 %v1431
        %v1433 = vlaneseq
        %v1434 = vshrl.u32 %v1433, 7
        %v1435 = vsub.s32 %v1432, %v1434
        %v1436 = vrot.slane %v1422, %v1435
        %v1437 = vcombine.high %v1413, 0.0
        %v1438 = vcombine.high %v1420, 0.0
        %v1439 = vcombine.high %v1429, 0.0
        %v1440 = vcombine.high %v1436, 0.0
        %v1441 = vcombine.low %v1413, %v1420
        %v1443 = vunpack.c.l.s4 1983009808
        %v1444 = vunpack.c.0.s8 %v1443
        %v1445 = vlaneseq
        %v1446 = vshrl.u32 %v1445, 7
        %v1447 = vsub.s32 %v1444, %v1446
        %v1448 = vrot.slane %v1441, %v1447
        %v1449 = vcombine.low %v1437, %v1438
        %v1451 = vunpack.c.l.s4 1983009808
        %v1452 = vunpack.c.0.s8 %v1451
        %v1453 = vlaneseq
        %v1454 = vshrl.u32 %v1453, 7
        %v1455 = vsub.s32 %v1452, %v1454
        %v1456 = vrot.slane %v1449, %v1455
        %v1457 = vcombine.low %v1429, %v1436
        %v1459 = vunpack.c.l.s4 1983009808
        %v1460 = vunpack.c.0.s8 %v1459
        %v1461 = vlaneseq
        %v1462 = vshrl.u32 %v1461, 7
        %v1463 = vsub.s32 %v1460, %v1462
        %v1464 = vrot.slane %v1457, %v1463
        %v1465 = vcombine.low %v1439, %v1440
        %v1467 = vunpack.c.l.s4 1983009808
        %v1468 = vunpack.c.0.s8 %v1467
        %v1469 = vlaneseq
        %v1470 = vshrl.u32 %v1469, 7
        %v1471 = vsub.s32 %v1468, %v1470
        %v1472 = vrot.slane %v1465, %v1471
        %v1473 = vcombine.low %v1448, %v1456
        %v1474 = vcombine.high %v1448, %v1456
        %v1476 = vunpack.c.l.s4 1934713408
        %v1477 = vunpack.c.0.s8 %v1476
        %v1478 = vlaneseq
        %v1479 = vshrl.u32 %v1478, 7
        %v1480 = vsub.s32 %v1477, %v1479
        %v1481 = vrot.slane %v1473, %v1480
        %v1483 = vunpack.c.l.s4 1934713408
        %v1484 = vunpack.c.0.s8 %v1483
        %v1485 = vlaneseq
        %v1486 = vshrl.u32 %v1485, 7
        %v1487 = vsub.s32 %v1484, %v1486
        %v1488 = vrot.slane %v1474, %v1487
        %v1489 = vcombine.low %v1464, %v1472
        %v1490 = vcombine.high %v1464, %v1472
        %v1492 = vunpack.c.l.s4 1934713408
        %v1493 = vunpack.c.0.s8 %v1492
        %v1494 = vlaneseq
        %v1495 = vshrl.u32 %v1494, 7
        %v1496 = vsub.s32 %v1493, %v1495
        %v1497 = vrot.slane %v1489, %v1496
        %v1499 = vunpack.c.l.s4 1934713408
        %v1500 = vunpack.c.0.s8 %v1499
        %v1501 = vlaneseq
        %v1502 = vshrl.u32 %v1501, 7
        %v1503 = vsub.s32 %v1500, %v1502
        %v1504 = vrot.slane %v1490, %v1503
        %v1505 = vcombine.low %v1481, %v1497
        %v1506 = vcombine.high %v1481, %v1497
        %v1507 = vcombine.low %v1488, %v1504
        %v1508 = vcombine.high %v1488, %v1504
        %v1509 = vpack.c.bf16 %v1505, %v1505
        %v1510 = vpack.c.bf16 %v1506, %v1506
        %v1511 = vpack.c.bf16 %v1507, %v1507
        %v1512 = vpack.c.bf16 %v1508, %v1508
        %v1513 = vld [vmem:[#allocation2] sm:$0xff]
        %v1514 = vld [vmem:[#allocation2 + $0x8] sm:$0xff]
        %v1515 = vld [vmem:[#allocation2 + $0x10] sm:$0xff]
        %v1516 = vld [vmem:[#allocation2 + $0x18] sm:$0xff]
        %v1517 = vld [vmem:[%s402] sm:$0x1]
        %v1519 = vlaneseq
        %v1520 = vshrl.u32 %v1519, 7
        %v1521 = vsub.s32 0, %v1520
        %v1522 = vrot.slane %v1517, %v1521
        %vm1524 = vcmask 261120
        %v1526 = vsel %vm1524, %v1509, 0
        %v1529 = vsel %vm1524, %v1513, 0
        %1531 = vmatprep.subr.bf16.mxu0 0
        %1532 = vmatpush1.bf16.xpose.msra.mxu0 %v1529
        %1533 = vmatprep.subr.bf16.mxu0 0
        %1534 = vmatpush1.bf16.xpose.msra.mxu0 0
        %1535 = vmatprep.subr.bf16.mxu0 0
        %1536 = vmatpush1.bf16.xpose.msra.mxu0 0
        %1537 = vmatprep.subr.bf16.mxu0 0
        %1538 = vmatpush1.bf16.xpose.msra.mxu0 0
        %1539 = vmatprep.subr.bf16.mxu0 0
        %1540 = vmatpush1.bf16.xpose.msra.mxu0 0
        %1541 = vmatprep.subr.bf16.mxu0 0
        %1542 = vmatpush1.bf16.xpose.msra.mxu0 0
        %1543 = vmatprep.subr.bf16.mxu0 0
        %1544 = vmatpush1.bf16.xpose.msra.mxu0 0
        %1545 = vmatprep.subr.bf16.mxu0 0
        %1546 = vmatpush1.bf16.xpose.msra.mxu0 0
        %1547 = vmatprep.subr.bf16.mxu0 0
        %1548 = vmatpush1.bf16.xpose.msra.mxu0 0
        %1549 = vmatprep.subr.bf16.mxu0 0
        %1550 = vmatpush1.bf16.xpose.msra.mxu0 0
        %1551 = vmatprep.subr.bf16.mxu0 0
        %1552 = vmatpush1.bf16.xpose.msra.mxu0 0
        %1553 = vmatprep.subr.bf16.mxu0 0
        %1554 = vmatpush1.bf16.xpose.msra.mxu0 0
        %1555 = vmatprep.subr.bf16.mxu0 0
        %1556 = vmatpush1.bf16.xpose.msra.mxu0 0
        %1557 = vmatprep.subr.bf16.mxu0 0
        %1558 = vmatpush1.bf16.xpose.msra.mxu0 0
        %1559 = vmatprep.subr.bf16.mxu0 0
        %1560 = vmatpush1.bf16.xpose.msra.mxu0 0
        %1561 = vmatprep.subr.bf16.mxu0 0
        %1562 = vmatpush1.bf16.xpose.msra.mxu0 0
        %1563 = vmatprep.mubr.bf16.mxu0 0
        %1564 = vmatmul.mubr.bf16.gmra.mrb[0].mxu0 %v1526
        %v1565 = vpop.f32.mrb[0].mxu0
        %v1566 = vadd.f32 %v1522, %v1565
        %v1567 = vpop.f32.mrb[0].mxu0
        %v1568 = vpop.f32.mrb[0].mxu0
        %v1569 = vpop.f32.mrb[0].mxu0
        %1570 = vdwg.mxu0
        %v1572 = vsel %vm1524, %v1510, 0
        %v1575 = vsel %vm1524, %v1514, 0
        %1577 = vmatprep.subr.bf16.mxu0 0
        %1578 = vmatpush1.bf16.xpose.msra.mxu0 %v1575
        %1579 = vmatprep.subr.bf16.mxu0 0
        %1580 = vmatpush1.bf16.xpose.msra.mxu0 0
        %1581 = vmatprep.subr.bf16.mxu0 0
        %1582 = vmatpush1.bf16.xpose.msra.mxu0 0
        %1583 = vmatprep.subr.bf16.mxu0 0
        %1584 = vmatpush1.bf16.xpose.msra.mxu0 0
        %1585 = vmatprep.subr.bf16.mxu0 0
        %1586 = vmatpush1.bf16.xpose.msra.mxu0 0
        %1587 = vmatprep.subr.bf16.mxu0 0
        %1588 = vmatpush1.bf16.xpose.msra.mxu0 0
        %1589 = vmatprep.subr.bf16.mxu0 0
        %1590 = vmatpush1.bf16.xpose.msra.mxu0 0
        %1591 = vmatprep.subr.bf16.mxu0 0
        %1592 = vmatpush1.bf16.xpose.msra.mxu0 0
        %1593 = vmatprep.subr.bf16.mxu0 0
        %1594 = vmatpush1.bf16.xpose.msra.mxu0 0
        %1595 = vmatprep.subr.bf16.mxu0 0
        %1596 = vmatpush1.bf16.xpose.msra.mxu0 0
        %1597 = vmatprep.subr.bf16.mxu0 0
        %1598 = vmatpush1.bf16.xpose.msra.mxu0 0
        %1599 = vmatprep.subr.bf16.mxu0 0
        %1600 = vmatpush1.bf16.xpose.msra.mxu0 0
        %1601 = vmatprep.subr.bf16.mxu0 0
        %1602 = vmatpush1.bf16.xpose.msra.mxu0 0
        %1603 = vmatprep.subr.bf16.mxu0 0
        %1604 = vmatpush1.bf16.xpose.msra.mxu0 0
        %1605 = vmatprep.subr.bf16.mxu0 0
        %1606 = vmatpush1.bf16.xpose.msra.mxu0 0
        %1607 = vmatprep.subr.bf16.mxu0 0
        %1608 = vmatpush1.bf16.xpose.msra.mxu0 0
        %1609 = vmatprep.mubr.bf16.mxu0 0
        %1610 = vmatmul.mubr.bf16.gmra.mrb[0].mxu0 %v1572
        %v1611 = vpop.f32.mrb[0].mxu0
        %v1612 = vadd.f32 %v1522, %v1611
        %v1613 = vpop.f32.mrb[0].mxu0
        %v1614 = vpop.f32.mrb[0].mxu0
        %v1615 = vpop.f32.mrb[0].mxu0
        %1616 = vdwg.mxu0
        %v1618 = vsel %vm1524, %v1511, 0
        %v1621 = vsel %vm1524, %v1515, 0
        %1623 = vmatprep.subr.bf16.mxu0 0
        %1624 = vmatpush1.bf16.xpose.msra.mxu0 %v1621
        %1625 = vmatprep.subr.bf16.mxu0 0
        %1626 = vmatpush1.bf16.xpose.msra.mxu0 0
        %1627 = vmatprep.subr.bf16.mxu0 0
        %1628 = vmatpush1.bf16.xpose.msra.mxu0 0
        %1629 = vmatprep.subr.bf16.mxu0 0
        %1630 = vmatpush1.bf16.xpose.msra.mxu0 0
        %1631 = vmatprep.subr.bf16.mxu0 0
        %1632 = vmatpush1.bf16.xpose.msra.mxu0 0
        %1633 = vmatprep.subr.bf16.mxu0 0
        %1634 = vmatpush1.bf16.xpose.msra.mxu0 0
        %1635 = vmatprep.subr.bf16.mxu0 0
        %1636 = vmatpush1.bf16.xpose.msra.mxu0 0
        %1637 = vmatprep.subr.bf16.mxu0 0
        %1638 = vmatpush1.bf16.xpose.msra.mxu0 0
        %1639 = vmatprep.subr.bf16.mxu0 0
        %1640 = vmatpush1.bf16.xpose.msra.mxu0 0
        %1641 = vmatprep.subr.bf16.mxu0 0
        %1642 = vmatpush1.bf16.xpose.msra.mxu0 0
        %1643 = vmatprep.subr.bf16.mxu0 0
        %1644 = vmatpush1.bf16.xpose.msra.mxu0 0
        %1645 = vmatprep.subr.bf16.mxu0 0
        %1646 = vmatpush1.bf16.xpose.msra.mxu0 0
        %1647 = vmatprep.subr.bf16.mxu0 0
        %1648 = vmatpush1.bf16.xpose.msra.mxu0 0
        %1649 = vmatprep.subr.bf16.mxu0 0
        %1650 = vmatpush1.bf16.xpose.msra.mxu0 0
        %1651 = vmatprep.subr.bf16.mxu0 0
        %1652 = vmatpush1.bf16.xpose.msra.mxu0 0
        %1653 = vmatprep.subr.bf16.mxu0 0
        %1654 = vmatpush1.bf16.xpose.msra.mxu0 0
        %1655 = vmatprep.mubr.bf16.mxu0 0
        %1656 = vmatmul.mubr.bf16.gmra.mrb[0].mxu0 %v1618
        %v1657 = vpop.f32.mrb[0].mxu0
        %v1658 = vadd.f32 %v1522, %v1657
        %v1659 = vpop.f32.mrb[0].mxu0
        %v1660 = vpop.f32.mrb[0].mxu0
        %v1661 = vpop.f32.mrb[0].mxu0
        %1662 = vdwg.mxu0
        %v1664 = vsel %vm1524, %v1512, 0
        %v1667 = vsel %vm1524, %v1516, 0
        %1669 = vmatprep.subr.bf16.mxu0 0
        %1670 = vmatpush1.bf16.xpose.msra.mxu0 %v1667
        %1671 = vmatprep.subr.bf16.mxu0 0
        %1672 = vmatpush1.bf16.xpose.msra.mxu0 0
        %1673 = vmatprep.subr.bf16.mxu0 0
        %1674 = vmatpush1.bf16.xpose.msra.mxu0 0
        %1675 = vmatprep.subr.bf16.mxu0 0
        %1676 = vmatpush1.bf16.xpose.msra.mxu0 0
        %1677 = vmatprep.subr.bf16.mxu0 0
        %1678 = vmatpush1.bf16.xpose.msra.mxu0 0
        %1679 = vmatprep.subr.bf16.mxu0 0
        %1680 = vmatpush1.bf16.xpose.msra.mxu0 0
        %1681 = vmatprep.subr.bf16.mxu0 0
        %1682 = vmatpush1.bf16.xpose.msra.mxu0 0
        %1683 = vmatprep.subr.bf16.mxu0 0
        %1684 = vmatpush1.bf16.xpose.msra.mxu0 0
        %1685 = vmatprep.subr.bf16.mxu0 0
        %1686 = vmatpush1.bf16.xpose.msra.mxu0 0
        %1687 = vmatprep.subr.bf16.mxu0 0
        %1688 = vmatpush1.bf16.xpose.msra.mxu0 0
        %1689 = vmatprep.subr.bf16.mxu0 0
        %1690 = vmatpush1.bf16.xpose.msra.mxu0 0
        %1691 = vmatprep.subr.bf16.mxu0 0
        %1692 = vmatpush1.bf16.xpose.msra.mxu0 0
        %1693 = vmatprep.subr.bf16.mxu0 0
        %1694 = vmatpush1.bf16.xpose.msra.mxu0 0
        %1695 = vmatprep.subr.bf16.mxu0 0
        %1696 = vmatpush1.bf16.xpose.msra.mxu0 0
        %1697 = vmatprep.subr.bf16.mxu0 0
        %1698 = vmatpush1.bf16.xpose.msra.mxu0 0
        %1699 = vmatprep.subr.bf16.mxu0 0
        %1700 = vmatpush1.bf16.xpose.msra.mxu0 0
        %1701 = vmatprep.mubr.bf16.mxu0 0
        %1702 = vmatmul.mubr.bf16.gmra.mrb[0].mxu0 %v1664
        %v1703 = vpop.f32.mrb[0].mxu0
        %v1704 = vadd.f32 %v1522, %v1703
        %v1705 = vpop.f32.mrb[0].mxu0
        %v1706 = vpop.f32.mrb[0].mxu0
        %v1707 = vpop.f32.mrb[0].mxu0
        %1708 = vdwg.mxu0
        %vm1709 = vcmask 130048
        %v1710 = vsel %vm1709, %v1566, -inf
        %1711 = vmax.xlane.f32.xlu0 %v1710
        %v1712 = vpop.xlane.xlu0 %1711
        %v1713 = vsel %vm1709, %v1612, -inf
        %1714 = vmax.xlane.f32.xlu0 %v1713
        %v1715 = vpop.xlane.xlu0 %1714
        %v1716 = vsel %vm1709, %v1658, -inf
        %1717 = vmax.xlane.f32.xlu0 %v1716
        %v1718 = vpop.xlane.xlu0 %1717
        %v1719 = vsel %vm1709, %v1704, -inf
        %1720 = vmax.xlane.f32.xlu0 %v1719
        %v1721 = vpop.xlane.xlu0 %1720
        %v1722 = vsub.f32 %v1566, %v1712
        %v1723 = vsub.f32 %v1612, %v1715
        %v1724 = vsub.f32 %v1658, %v1718
        %v1725 = vsub.f32 %v1704, %v1721
        %v1726 = vmul.f32 %v1722, 1.442695
        %v1727 = vpow.pop %v1726
        %v1728 = vmul.f32 %v1723, 1.442695
        %v1729 = vpow.pop %v1728
        %v1730 = vmul.f32 %v1724, 1.442695
        %v1731 = vpow.pop %v1730
        %v1732 = vmul.f32 %v1725, 1.442695
        %v1733 = vpow.pop %v1732
        %v1734 = vsel %vm1709, %v1727, 0.0
        %1735 = vadd.xlane.f32.xlu0 %v1734
        %v1736 = vpop.xlane.xlu0 %1735
        %v1737 = vsel %vm1709, %v1729, 0.0
        %1738 = vadd.xlane.f32.xlu0 %v1737
        %v1739 = vpop.xlane.xlu0 %1738
        %v1740 = vsel %vm1709, %v1731, 0.0
        %1741 = vadd.xlane.f32.xlu0 %v1740
        %v1742 = vpop.xlane.xlu0 %1741
        %v1743 = vsel %vm1709, %v1733, 0.0
        %1744 = vadd.xlane.f32.xlu0 %v1743
        %v1745 = vpop.xlane.xlu0 %1744
        %v1746 = vrcp.pop %v1736
        %v1747 = vrcp.pop %v1739
        %v1748 = vrcp.pop %v1742
        %v1749 = vrcp.pop %v1745
        %v1750 = vmul.f32 %v1727, %v1746
        %v1751 = vmul.f32 %v1729, %v1747
        %v1752 = vmul.f32 %v1731, %v1748
        %v1753 = vmul.f32 %v1733, %v1749
        %v1754 = vpack.c.bf16 %v1750, %v1750
        %v1755 = vpack.c.bf16 %v1751, %v1751
        %v1756 = vpack.c.bf16 %v1752, %v1752
        %v1757 = vpack.c.bf16 %v1753, %v1753
        %v1758 = vld [vmem:[#allocation3] sm:$0xff]
        %v1759 = vld [vmem:[#allocation3 + $0x8] sm:$0xff]
        %v1760 = vld [vmem:[#allocation3 + $0x10] sm:$0xff]
        %v1761 = vld [vmem:[#allocation3 + $0x18] sm:$0xff]
        %v1763 = vsel %vm1709, %v1754, 0
        %1765 = vmatprep.subr.bf16.mxu0 0
        %1766 = vmatpush1.bf16.msra.mxu0 %v1758
        %1767 = vmatprep.subr.bf16.mxu0 0
        %1768 = vmatpush1.bf16.msra.mxu0 0
        %1769 = vmatprep.subr.bf16.mxu0 0
        %1770 = vmatpush1.bf16.msra.mxu0 0
        %1771 = vmatprep.subr.bf16.mxu0 0
        %1772 = vmatpush1.bf16.msra.mxu0 0
        %1773 = vmatprep.subr.bf16.mxu0 0
        %1774 = vmatpush1.bf16.msra.mxu0 0
        %1775 = vmatprep.subr.bf16.mxu0 0
        %1776 = vmatpush1.bf16.msra.mxu0 0
        %1777 = vmatprep.subr.bf16.mxu0 0
        %1778 = vmatpush1.bf16.msra.mxu0 0
        %1779 = vmatprep.subr.bf16.mxu0 0
        %1780 = vmatpush1.bf16.msra.mxu0 0
        %1781 = vmatprep.subr.bf16.mxu0 0
        %1782 = vmatpush1.bf16.msra.mxu0 0
        %1783 = vmatprep.subr.bf16.mxu0 0
        %1784 = vmatpush1.bf16.msra.mxu0 0
        %1785 = vmatprep.subr.bf16.mxu0 0
        %1786 = vmatpush1.bf16.msra.mxu0 0
        %1787 = vmatprep.subr.bf16.mxu0 0
        %1788 = vmatpush1.bf16.msra.mxu0 0
        %1789 = vmatprep.subr.bf16.mxu0 0
        %1790 = vmatpush1.bf16.msra.mxu0 0
        %1791 = vmatprep.subr.bf16.mxu0 0
        %1792 = vmatpush1.bf16.msra.mxu0 0
        %1793 = vmatprep.subr.bf16.mxu0 0
        %1794 = vmatpush1.bf16.msra.mxu0 0
        %1795 = vmatprep.subr.bf16.mxu0 0
        %1796 = vmatpush1.bf16.msra.mxu0 0
        %1797 = vmatprep.mubr.bf16.mxu0 0
        %1798 = vmatmul.mubr.bf16.gmra.mrb[0].mxu0 %v1763
        %v1799 = vpop.f32.mrb[0].mxu0
        %v1800 = vadd.f32 0.0, %v1799
        %v1801 = vpop.f32.mrb[0].mxu0
        %v1802 = vpop.f32.mrb[0].mxu0
        %v1803 = vpop.f32.mrb[0].mxu0
        %1804 = vdwg.mxu0
        %v1806 = vsel %vm1709, %v1755, 0
        %1808 = vmatprep.subr.bf16.mxu0 0
        %1809 = vmatpush1.bf16.msra.mxu0 %v1759
        %1810 = vmatprep.subr.bf16.mxu0 0
        %1811 = vmatpush1.bf16.msra.mxu0 0
        %1812 = vmatprep.subr.bf16.mxu0 0
        %1813 = vmatpush1.bf16.msra.mxu0 0
        %1814 = vmatprep.subr.bf16.mxu0 0
        %1815 = vmatpush1.bf16.msra.mxu0 0
        %1816 = vmatprep.subr.bf16.mxu0 0
        %1817 = vmatpush1.bf16.msra.mxu0 0
        %1818 = vmatprep.subr.bf16.mxu0 0
        %1819 = vmatpush1.bf16.msra.mxu0 0
        %1820 = vmatprep.subr.bf16.mxu0 0
        %1821 = vmatpush1.bf16.msra.mxu0 0
        %1822 = vmatprep.subr.bf16.mxu0 0
        %1823 = vmatpush1.bf16.msra.mxu0 0
        %1824 = vmatprep.subr.bf16.mxu0 0
        %1825 = vmatpush1.bf16.msra.mxu0 0
        %1826 = vmatprep.subr.bf16.mxu0 0
        %1827 = vmatpush1.bf16.msra.mxu0 0
        %1828 = vmatprep.subr.bf16.mxu0 0
        %1829 = vmatpush1.bf16.msra.mxu0 0
        %1830 = vmatprep.subr.bf16.mxu0 0
        %1831 = vmatpush1.bf16.msra.mxu0 0
        %1832 = vmatprep.subr.bf16.mxu0 0
        %1833 = vmatpush1.bf16.msra.mxu0 0
        %1834 = vmatprep.subr.bf16.mxu0 0
        %1835 = vmatpush1.bf16.msra.mxu0 0
        %1836 = vmatprep.subr.bf16.mxu0 0
        %1837 = vmatpush1.bf16.msra.mxu0 0
        %1838 = vmatprep.subr.bf16.mxu0 0
        %1839 = vmatpush1.bf16.msra.mxu0 0
        %1840 = vmatprep.mubr.bf16.mxu0 0
        %1841 = vmatmul.mubr.bf16.gmra.mrb[0].mxu0 %v1806
        %v1842 = vpop.f32.mrb[0].mxu0
        %v1843 = vadd.f32 0.0, %v1842
        %v1844 = vpop.f32.mrb[0].mxu0
        %v1845 = vpop.f32.mrb[0].mxu0
        %v1846 = vpop.f32.mrb[0].mxu0
        %1847 = vdwg.mxu0
        %v1849 = vsel %vm1709, %v1756, 0
        %1851 = vmatprep.subr.bf16.mxu0 0
        %1852 = vmatpush1.bf16.msra.mxu0 %v1760
        %1853 = vmatprep.subr.bf16.mxu0 0
        %1854 = vmatpush1.bf16.msra.mxu0 0
        %1855 = vmatprep.subr.bf16.mxu0 0
        %1856 = vmatpush1.bf16.msra.mxu0 0
        %1857 = vmatprep.subr.bf16.mxu0 0
        %1858 = vmatpush1.bf16.msra.mxu0 0
        %1859 = vmatprep.subr.bf16.mxu0 0
        %1860 = vmatpush1.bf16.msra.mxu0 0
        %1861 = vmatprep.subr.bf16.mxu0 0
        %1862 = vmatpush1.bf16.msra.mxu0 0
        %1863 = vmatprep.subr.bf16.mxu0 0
        %1864 = vmatpush1.bf16.msra.mxu0 0
        %1865 = vmatprep.subr.bf16.mxu0 0
        %1866 = vmatpush1.bf16.msra.mxu0 0
        %1867 = vmatprep.subr.bf16.mxu0 0
        %1868 = vmatpush1.bf16.msra.mxu0 0
        %1869 = vmatprep.subr.bf16.mxu0 0
        %1870 = vmatpush1.bf16.msra.mxu0 0
        %1871 = vmatprep.subr.bf16.mxu0 0
        %1872 = vmatpush1.bf16.msra.mxu0 0
        %1873 = vmatprep.subr.bf16.mxu0 0
        %1874 = vmatpush1.bf16.msra.mxu0 0
        %1875 = vmatprep.subr.bf16.mxu0 0
        %1876 = vmatpush1.bf16.msra.mxu0 0
        %1877 = vmatprep.subr.bf16.mxu0 0
        %1878 = vmatpush1.bf16.msra.mxu0 0
        %1879 = vmatprep.subr.bf16.mxu0 0
        %1880 = vmatpush1.bf16.msra.mxu0 0
        %1881 = vmatprep.subr.bf16.mxu0 0
        %1882 = vmatpush1.bf16.msra.mxu0 0
        %1883 = vmatprep.mubr.bf16.mxu0 0
        %1884 = vmatmul.mubr.bf16.gmra.mrb[0].mxu0 %v1849
        %v1885 = vpop.f32.mrb[0].mxu0
        %v1886 = vadd.f32 0.0, %v1885
        %v1887 = vpop.f32.mrb[0].mxu0
        %v1888 = vpop.f32.mrb[0].mxu0
        %v1889 = vpop.f32.mrb[0].mxu0
        %1890 = vdwg.mxu0
        %v1892 = vsel %vm1709, %v1757, 0
        %1894 = vmatprep.subr.bf16.mxu0 0
        %1895 = vmatpush1.bf16.msra.mxu0 %v1761
        %1896 = vmatprep.subr.bf16.mxu0 0
        %1897 = vmatpush1.bf16.msra.mxu0 0
        %1898 = vmatprep.subr.bf16.mxu0 0
        %1899 = vmatpush1.bf16.msra.mxu0 0
        %1900 = vmatprep.subr.bf16.mxu0 0
        %1901 = vmatpush1.bf16.msra.mxu0 0
        %1902 = vmatprep.subr.bf16.mxu0 0
        %1903 = vmatpush1.bf16.msra.mxu0 0
        %1904 = vmatprep.subr.bf16.mxu0 0
        %1905 = vmatpush1.bf16.msra.mxu0 0
        %1906 = vmatprep.subr.bf16.mxu0 0
        %1907 = vmatpush1.bf16.msra.mxu0 0
        %1908 = vmatprep.subr.bf16.mxu0 0
        %1909 = vmatpush1.bf16.msra.mxu0 0
        %1910 = vmatprep.subr.bf16.mxu0 0
        %1911 = vmatpush1.bf16.msra.mxu0 0
        %1912 = vmatprep.subr.bf16.mxu0 0
        %1913 = vmatpush1.bf16.msra.mxu0 0
        %1914 = vmatprep.subr.bf16.mxu0 0
        %1915 = vmatpush1.bf16.msra.mxu0 0
        %1916 = vmatprep.subr.bf16.mxu0 0
        %1917 = vmatpush1.bf16.msra.mxu0 0
        %1918 = vmatprep.subr.bf16.mxu0 0
        %1919 = vmatpush1.bf16.msra.mxu0 0
        %1920 = vmatprep.subr.bf16.mxu0 0
        %1921 = vmatpush1.bf16.msra.mxu0 0
        %1922 = vmatprep.subr.bf16.mxu0 0
        %1923 = vmatpush1.bf16.msra.mxu0 0
        %1924 = vmatprep.subr.bf16.mxu0 0
        %1925 = vmatpush1.bf16.msra.mxu0 0
        %1926 = vmatprep.mubr.bf16.mxu0 0
        %1927 = vmatmul.mubr.bf16.gmra.mrb[0].mxu0 %v1892
        %v1928 = vpop.f32.mrb[0].mxu0
        %v1929 = vadd.f32 0.0, %v1928
        %v1930 = vpop.f32.mrb[0].mxu0
        %v1931 = vpop.f32.mrb[0].mxu0
        %v1932 = vpop.f32.mrb[0].mxu0
        %1933 = vdwg.mxu0
        %v1934 = vcombine.low %v1800, %v1886
        %v1935 = vcombine.high %v1800, %v1886
        %v1937 = vunpack.c.l.s4 1983009808
        %v1938 = vunpack.c.0.s8 %v1937
        %v1939 = vlaneseq
        %v1940 = vshrl.u32 %v1939, 7
        %v1941 = vsub.s32 %v1938, %v1940
        %v1942 = vrot.slane %v1934, %v1941
        %v1944 = vunpack.c.l.s4 1983009808
        %v1945 = vunpack.c.0.s8 %v1944
        %v1946 = vlaneseq
        %v1947 = vshrl.u32 %v1946, 7
        %v1948 = vsub.s32 %v1945, %v1947
        %v1949 = vrot.slane %v1935, %v1948
        %v1950 = vcombine.low %v1843, %v1929
        %v1951 = vcombine.high %v1843, %v1929
        %v1953 = vunpack.c.l.s4 1983009808
        %v1954 = vunpack.c.0.s8 %v1953
        %v1955 = vlaneseq
        %v1956 = vshrl.u32 %v1955, 7
        %v1957 = vsub.s32 %v1954, %v1956
        %v1958 = vrot.slane %v1950, %v1957
        %v1960 = vunpack.c.l.s4 1983009808
        %v1961 = vunpack.c.0.s8 %v1960
        %v1962 = vlaneseq
        %v1963 = vshrl.u32 %v1962, 7
        %v1964 = vsub.s32 %v1961, %v1963
        %v1965 = vrot.slane %v1951, %v1964
        %v1966 = vcombine.low %v1942, %v1958
        %v1967 = vcombine.high %v1942, %v1958
        %v1969 = vunpack.c.l.s4 1934713408
        %v1970 = vunpack.c.0.s8 %v1969
        %v1971 = vlaneseq
        %v1972 = vshrl.u32 %v1971, 7
        %v1973 = vsub.s32 %v1970, %v1972
        %v1974 = vrot.slane %v1966, %v1973
        %v1976 = vunpack.c.l.s4 1934713408
        %v1977 = vunpack.c.0.s8 %v1976
        %v1978 = vlaneseq
        %v1979 = vshrl.u32 %v1978, 7
        %v1980 = vsub.s32 %v1977, %v1979
        %v1981 = vrot.slane %v1967, %v1980
        %v1982 = vcombine.low %v1949, %v1965
        %v1983 = vcombine.high %v1949, %v1965
        %v1985 = vunpack.c.l.s4 1934713408
        %v1986 = vunpack.c.0.s8 %v1985
        %v1987 = vlaneseq
        %v1988 = vshrl.u32 %v1987, 7
        %v1989 = vsub.s32 %v1986, %v1988
        %v1990 = vrot.slane %v1982, %v1989
        %v1992 = vunpack.c.l.s4 1934713408
        %v1993 = vunpack.c.0.s8 %v1992
        %v1994 = vlaneseq
        %v1995 = vshrl.u32 %v1994, 7
        %v1996 = vsub.s32 %v1993, %v1995
        %v1997 = vrot.slane %v1983, %v1996
        %v1998 = vcombine.high %v1974, 0.0
        %v1999 = vcombine.high %v1981, 0.0
        %v2000 = vcombine.high %v1990, 0.0
        %v2001 = vcombine.high %v1997, 0.0
        %v2002 = vcombine.low %v1974, %v1981
        %v2004 = vunpack.c.l.s4 1983009808
        %v2005 = vunpack.c.0.s8 %v2004
        %v2006 = vlaneseq
        %v2007 = vshrl.u32 %v2006, 7
        %v2008 = vsub.s32 %v2005, %v2007
        %v2009 = vrot.slane %v2002, %v2008
        %v2010 = vcombine.low %v1998, %v1999
        %v2012 = vunpack.c.l.s4 1983009808
        %v2013 = vunpack.c.0.s8 %v2012
        %v2014 = vlaneseq
        %v2015 = vshrl.u32 %v2014, 7
        %v2016 = vsub.s32 %v2013, %v2015
        %v2017 = vrot.slane %v2010, %v2016
        %v2018 = vcombine.low %v1990, %v1997
        %v2020 = vunpack.c.l.s4 1983009808
        %v2021 = vunpack.c.0.s8 %v2020
        %v2022 = vlaneseq
        %v2023 = vshrl.u32 %v2022, 7
        %v2024 = vsub.s32 %v2021, %v2023
        %v2025 = vrot.slane %v2018, %v2024
        %v2026 = vcombine.low %v2000, %v2001
        %v2028 = vunpack.c.l.s4 1983009808
        %v2029 = vunpack.c.0.s8 %v2028
        %v2030 = vlaneseq
        %v2031 = vshrl.u32 %v2030, 7
        %v2032 = vsub.s32 %v2029, %v2031
        %v2033 = vrot.slane %v2026, %v2032
        %v2034 = vcombine.low %v2009, %v2017
        %v2035 = vcombine.high %v2009, %v2017
        %v2037 = vunpack.c.l.s4 1934713408
        %v2038 = vunpack.c.0.s8 %v2037
        %v2039 = vlaneseq
        %v2040 = vshrl.u32 %v2039, 7
        %v2041 = vsub.s32 %v2038, %v2040
        %v2042 = vrot.slane %v2034, %v2041
        %v2044 = vunpack.c.l.s4 1934713408
        %v2045 = vunpack.c.0.s8 %v2044
        %v2046 = vlaneseq
        %v2047 = vshrl.u32 %v2046, 7
        %v2048 = vsub.s32 %v2045, %v2047
        %v2049 = vrot.slane %v2035, %v2048
        %v2050 = vcombine.low %v2025, %v2033
        %v2051 = vcombine.high %v2025, %v2033
        %v2053 = vunpack.c.l.s4 1934713408
        %v2054 = vunpack.c.0.s8 %v2053
        %v2055 = vlaneseq
        %v2056 = vshrl.u32 %v2055, 7
        %v2057 = vsub.s32 %v2054, %v2056
        %v2058 = vrot.slane %v2050, %v2057
        %v2060 = vunpack.c.l.s4 1934713408
        %v2061 = vunpack.c.0.s8 %v2060
        %v2062 = vlaneseq
        %v2063 = vshrl.u32 %v2062, 7
        %v2064 = vsub.s32 %v2061, %v2063
        %v2065 = vrot.slane %v2051, %v2064
        %v2066 = vcombine.low %v2042, %v2058
        %v2067 = vcombine.high %v2042, %v2058
        %v2068 = vcombine.low %v2049, %v2065
        %v2069 = vcombine.high %v2049, %v2065
        %2071 = vrot.lane.b32.xlu0 %v2067, 32
        %v2072 = vpop.permute.xlu0 %2071
        %2075 = vrot.lane.b32.xlu0 %v2068, 64
        %v2076 = vpop.permute.xlu0 %2075
        %2079 = vrot.lane.b32.xlu0 %v2069, 96
        %v2080 = vpop.permute.xlu0 %2079
        %v2082 = vsel %vm1524, %v2066, %v2072
        %vm2083 = vcmask 523264
        %v2084 = vsel %vm2083, %v2082, %v2076
        %vm2085 = vcmask 785408
        %v2086 = vsel %vm2085, %v2084, %v2080
        %v2087 = vpack.c.bf16 %v2086, %v2086
        %v2088 = vld [vmem:[%s420] sm:$0xf]
        %v2089 = vld [vmem:[%s420 + $0x4] sm:$0xf]
        %v2090 = vld [vmem:[%s420 + $0x8] sm:$0xf]
        %v2091 = vld [vmem:[%s420 + $0xc] sm:$0xf]
        %v2092 = vld [vmem:[%s420 + $0x10] sm:$0xf]
        %v2093 = vld [vmem:[%s420 + $0x14] sm:$0xf]
        %v2094 = vld [vmem:[%s420 + $0x18] sm:$0xf]
        %v2095 = vld [vmem:[%s420 + $0x1c] sm:$0xf]
        %v2096 = vld [vmem:[%s420 + $0x20] sm:$0xf]
        %v2097 = vld [vmem:[%s420 + $0x24] sm:$0xf]
        %v2098 = vld [vmem:[%s420 + $0x28] sm:$0xf]
        %v2099 = vld [vmem:[%s420 + $0x2c] sm:$0xf]
        %v2100 = vld [vmem:[%s420 + $0x30] sm:$0xf]
        %v2101 = vld [vmem:[%s420 + $0x34] sm:$0xf]
        %v2102 = vld [vmem:[%s420 + $0x38] sm:$0xf]
        %v2103 = vld [vmem:[%s420 + $0x3c] sm:$0xf]
        %v2104 = vld [vmem:[%s482] sm:$0x1]
        %v2106 = vlaneseq
        %v2107 = vshrl.u32 %v2106, 7
        %v2108 = vsub.s32 0, %v2107
        %v2109 = vrot.slane %v2104, %v2108
        %v2127 = vunpack.c.l.b16 %v2088
        %v2128 = vunpack.c.l.b16 %v2089
        %v2129 = vunpack.c.l.b16 %v2090
        %v2130 = vunpack.c.l.b16 %v2091
        %v2131 = vunpack.c.l.b16 %v2092
        %v2132 = vunpack.c.l.b16 %v2093
        %v2133 = vunpack.c.l.b16 %v2094
        %v2134 = vunpack.c.l.b16 %v2095
        %v2135 = vunpack.c.l.b16 %v2096
        %v2136 = vunpack.c.l.b16 %v2097
        %v2137 = vunpack.c.l.b16 %v2098
        %v2138 = vunpack.c.l.b16 %v2099
        %v2139 = vunpack.c.l.b16 %v2100
        %v2140 = vunpack.c.l.b16 %v2101
        %v2141 = vunpack.c.l.b16 %v2102
        %v2142 = vunpack.c.l.b16 %v2103
        %v2143 = vpack.c.b16 %v2128, %v2127
        %v2144 = vpack.c.b16 %v2130, %v2129
        %v2145 = vpack.c.b16 %v2132, %v2131
        %v2146 = vpack.c.b16 %v2134, %v2133
        %v2147 = vpack.c.b16 %v2136, %v2135
        %v2148 = vpack.c.b16 %v2138, %v2137
        %v2149 = vpack.c.b16 %v2140, %v2139
        %v2150 = vpack.c.b16 %v2142, %v2141
        %2159 = vmatprep.subr.bf16.mxu0 0
        %2160 = vmatpush1.bf16.msra.mxu0 %v2143
        %2161 = vmatprep.subr.bf16.mxu0 0
        %2162 = vmatpush1.bf16.msra.mxu0 %v2144
        %2163 = vmatprep.subr.bf16.mxu0 0
        %2164 = vmatpush1.bf16.msra.mxu0 %v2145
        %2165 = vmatprep.subr.bf16.mxu0 0
        %2166 = vmatpush1.bf16.msra.mxu0 %v2146
        %2167 = vmatprep.subr.bf16.mxu0 0
        %2168 = vmatpush1.bf16.msra.mxu0 %v2147
        %2169 = vmatprep.subr.bf16.mxu0 0
        %2170 = vmatpush1.bf16.msra.mxu0 %v2148
        %2171 = vmatprep.subr.bf16.mxu0 0
        %2172 = vmatpush1.bf16.msra.mxu0 %v2149
        %2173 = vmatprep.subr.bf16.mxu0 0
        %2174 = vmatpush1.bf16.msra.mxu0 %v2150
        %2175 = vmatprep.subr.bf16.mxu0 0
        %2176 = vmatpush1.bf16.msra.mxu0 0
        %2177 = vmatprep.subr.bf16.mxu0 0
        %2178 = vmatpush1.bf16.msra.mxu0 0
        %2179 = vmatprep.subr.bf16.mxu0 0
        %2180 = vmatpush1.bf16.msra.mxu0 0
        %2181 = vmatprep.subr.bf16.mxu0 0
        %2182 = vmatpush1.bf16.msra.mxu0 0
        %2183 = vmatprep.subr.bf16.mxu0 0
        %2184 = vmatpush1.bf16.msra.mxu0 0
        %2185 = vmatprep.subr.bf16.mxu0 0
        %2186 = vmatpush1.bf16.msra.mxu0 0
        %2187 = vmatprep.subr.bf16.mxu0 0
        %2188 = vmatpush1.bf16.msra.mxu0 0
        %2189 = vmatprep.subr.bf16.mxu0 0
        %2190 = vmatpush1.bf16.msra.mxu0 0
        %2191 = vmatprep.mubr.bf16.mxu0 0
        %2192 = vmatmul.mubr.bf16.gmra.mrb[0].mxu0 %v2087
        %v2193 = vpop.f32.mrb[0].mxu0
        %v2194 = vadd.f32 %v2109, %v2193
        %v2195 = vpop.f32.mrb[0].mxu0
        %v2196 = vpop.f32.mrb[0].mxu0
        %v2197 = vpop.f32.mrb[0].mxu0
        %2198 = vdwg.mxu0
        %v2199 = vadd.f32 %v2194, %v1249
        %2200 = vadd.xlane.f32.xlu0 %v2199
        %v2201 = vpop.xlane.xlu0 %2200
        %v2202 = vrcp.pop 128.0
        %v2203 = vmul.f32 %v2201, %v2202
        %v2204 = vsub.f32 %v2199, %v2203
        %v2205 = vmul.f32 %v2204, %v2204
        %2206 = vadd.xlane.f32.xlu0 %v2205
        %v2207 = vpop.xlane.xlu0 %2206
        %v2208 = vmul.f32 %v2207, %v2202
        %v2209 = vadd.f32 %v2208, 1e-12
        %v2210 = vrsqrt.pop %v2209
        %v2211 = vmul.f32 %v2204, %v2210
        %v2212 = vld [vmem:[%s486] sm:$0x1]
        %v2214 = vlaneseq
        %v2215 = vshrl.u32 %v2214, 7
        %v2216 = vsub.s32 0, %v2215
        %v2217 = vrot.slane %v2212, %v2216
        %v2219 = vmul.f32 %v2211, %v2217
        %s2220 = scalar_lea.vmem %s486, 1
        %v2221 = vld [vmem:[%s2220] sm:$0x1]
        %v2223 = vlaneseq
        %v2224 = vshrl.u32 %v2223, 7
        %v2225 = vsub.s32 0, %v2224
        %v2226 = vrot.slane %v2221, %v2225
        %v2228 = vadd.f32 %v2219, %v2226
        %2229 = vst [vmem:[%s475] sm:$0xff] %v2228
        %s2230 = sand.u32 %s247, 1
        %s2231 = scalar_lea.sflag [#allocation6], %s2230
        %s2232 = sand.u32 %s247, 1
        %s2233 = smul.addr %s2232, 8
        %s2234 = scalar_lea.vmem [#allocation12], %s2233
        // Predicated region
        $region69: #{tpu_custom_call.1} parent=47 // pred_check
          %p2235 = pneg %p257
        $region70: #{tpu_custom_call.1} parent=47 // pred_check_branch
          %2237 = sbr.rel (%p2235) target = $region72
        $region71: #{tpu_custom_call.1} parent=47 // pred_region
          %s2239 = ssub.s32 128, 128
          %2240 = vsyncadd %s2231, %s2239
          %s2241 = smul.addr %s36, 2
          %s2242 = sadd.s32 %s37, %s2241
          %s2243 = smul.addr %s35, 4
          %s2244 = sadd.s32 %s2242, %s2243
          %s2245 = smul.addr %s2244, 128
          %s2246 = scalar_lea.hbm %s7, %s2245
          %s2248 = sshll.u32 %s2234, 4
          %s2249 = int_to_ptr.vmem [resolvable:$true] %s2248
          %2251 = dma.vmem_to_hbm [thread:$0]  %s2249, 128, %s2246, %s2231
        $region72: #{tpu_custom_call.1} parent=47 // pred_fallthru
          _
      $region48: #{tpu_custom_call.1} parent=5 // pred_fallthru
        _
      %p2252 = scmp.le.s32.totalorder 2, %s25
      // Predicated region
      $region73: #{tpu_custom_call.1} parent=5 // pred_check
        %p2253 = pneg %p2252
      $region74: #{tpu_custom_call.1} parent=5 // pred_check_branch
        %2255 = sbr.rel (%p2253) target = $region76
      $region75: #{tpu_custom_call.1} parent=5 // pred_region
        %s2256 = ssub.s32 %s25, 2
        // Predicated region
        $region77: #{tpu_custom_call.1} parent=75 // pred_check
          %p2257 = pneg %p263
        $region78: #{tpu_custom_call.1} parent=75 // pred_check_branch
          %2259 = sbr.rel (%p2257) target = $region80
        $region79: #{tpu_custom_call.1} parent=75 // pred_region
          %s2260 = sand.u32 %s248, 1
          %s2261 = scalar_lea.sflag [#allocation6], %s2260
          %s2262 = sand.u32 %s248, 1
          %s2263 = smul.addr %s2262, 8
          %s2264 = scalar_lea.vmem [#allocation12], %s2263
          %2265 = dma.done %s2261, 128
        $region80: #{tpu_custom_call.1} parent=75 // pred_fallthru
          _
      $region76: #{tpu_custom_call.1} parent=5 // pred_fallthru
        _
    $region6: #{tpu_custom_call.1} parent=1 // loop_footer
      %s29 = sadd.s32 1, %s25
    $region7: #{tpu_custom_call.1} parent=1 // loop_footer_branch
      %24 = sbr.rel target = $region3
    $region8: #{tpu_custom_call.1} parent=1 // loop_exit
      _
    %2266 = vsyncpa [#allocation5], 1
    %s2267 = scalar_lea.sflag [#allocation5], 1
    %2268 = vsyncpa %s2267, 1
    %2269 = vsyncpa [#allocation8], 1
    %s2270 = scalar_lea.sflag [#allocation8], 1
    %2271 = vsyncpa %s2270, 1
    %2272 = vsyncpa [#allocation11], 1
    %s2273 = scalar_lea.sflag [#allocation11], 1
    %2274 = vsyncpa %s2273, 1
    %2275 = vsyncpa [#allocation6], 1
    %s2276 = scalar_lea.sflag [#allocation6], 1
    %2277 = vsyncpa %s2276, 1

</llo_original>
